<compile_context>
chip_gen: v7x
topology: tpu7x:2x2x1
jax: 0.10.0
libtpu: 0.0.40
codegen_flags: <defaults>
</compile_context>

<pallas_src>
import functools

import jax
import jax.numpy as jnp
from jax.experimental import pallas as pl
from jax.experimental.pallas import tpu as pltpu


# ----------------------------------------------------------------------------- kernel
def _sdpa_kernel(has_prev, has_mask, has_kpm, emit_scores,
                 scale_ref, q_ref, k_ref, v_ref, *refs):
    """One grid step: BH_TILE (batch*head) slices x TQ query rows, full s_len."""
    idx = 0
    prev_ref = mask_ref = kpm_ref = None
    if has_prev:
        prev_ref = refs[idx]; idx += 1
    if has_mask:
        mask_ref = refs[idx]; idx += 1
    if has_kpm:
        kpm_ref = refs[idx]; idx += 1
    out_ref = refs[idx]
    attn_ref = refs[idx + 1]
    scores_ref = refs[idx + 2] if emit_scores else None

    scale = scale_ref[0]

    # Fold the scale into q: touches Lq*Dk elements instead of the Lq*Ls score tile.
    q = (q_ref[...] * scale).astype(q_ref.dtype)          # (B, TQ, Dk)
    k = k_ref[...]                                        # (B, Dk, Ls)
    v = v_ref[...]                                        # (B, Ls, Dv)

    # MXU fed in the input dtype; f32 accumulation.
    scores = jnp.einsum('bqd,bds->bqs', q, k,
                        preferred_element_type=jnp.float32)

    if has_prev:
        scores = scores + prev_ref[...].astype(jnp.float32)     # (B, TQ, Ls)
    if has_mask:
        scores = scores + mask_ref[...].astype(jnp.float32)     # (1, TQ, Ls) bcast
    if has_kpm:
        scores = scores + kpm_ref[...].astype(jnp.float32)      # (B, 1, Ls)  bcast

    if emit_scores:
        scores_ref[...] = scores.astype(scores_ref.dtype)

    # Softmax over s_len in f32; divide goes to the EUP slot.
    m = jnp.max(scores, axis=-1, keepdims=True)
    e = jnp.exp(scores - m)
    denom = jnp.sum(e, axis=-1, keepdims=True)
    attn = e * pl.reciprocal(denom, approx=True)
    attn_ref[...] = attn.astype(attn_ref.dtype)

    # Second matmul in the value dtype (bf16-friendly), f32 accumulation.
    out = jnp.einsum('bqs,bsv->bqv', attn.astype(v_ref.dtype), v,
                     preferred_element_type=jnp.float32)
    out_ref[...] = out.astype(out_ref.dtype)


# ----------------------------------------------------------------------------- tiling helpers
def _largest_divisor_at_most(n, cap):
    cap = max(1, min(n, cap))
    for t in range(cap, 0, -1):
        if n % t == 0:
            return t
    return 1


def _choose_bh_tile(bh):
    # Batch several (b, h) slices per step, but keep >=2 grid steps when possible
    # so both v7x TensorCores get work.
    if bh <= 1:
        return 1
    return _largest_divisor_at_most(bh, min(16, max(1, bh // 2)))


def _choose_q_tile(q_len, cap=256):
    if q_len <= cap:
        return q_len
    for t in range(cap, 7, -1):
        if q_len % t == 0 and t % 8 == 0:        # keep the (8,128) tiling rule happy
            return t
    return q_len                                  # fall back to one full-length block


def _nbytes(shape, dtype):
    n = 1
    for s in shape:
        n *= int(s)
    return n * jnp.dtype(dtype).itemsize


# ----------------------------------------------------------------------------- wrapper
def scaled_dot_product_attention(q, k, v, scale, prev=None,
                                 key_padding_mask=None, attn_mask=None,
                                 res_attention=False):
    """JAX/Pallas equivalent of _ScaledDotProductAttention.forward (eval mode)."""
    bs, n_heads, q_len, d_k = q.shape
    s_len = k.shape[-1]
    d_v = v.shape[-1]
    BH = bs * n_heads
    neg_inf = jnp.float32(float("-inf"))

    has_prev = prev is not None
    has_mask = attn_mask is not None
    has_kpm = key_padding_mask is not None

    bh_tile = _choose_bh_tile(BH)
    q_tile = _choose_q_tile(q_len)
    grid = (BH // bh_tile, q_len // q_tile)

    qf = q.reshape(BH, q_len, d_k)
    kf = k.reshape(BH, d_k, s_len)
    vf = v.reshape(BH, s_len, d_v)
    scale_arr = jnp.asarray(scale, jnp.float32).reshape((1,))

    in_specs = [
        pl.BlockSpec((bh_tile, q_tile, d_k), lambda b, qt, s: (b, qt, 0)),
        pl.BlockSpec((bh_tile, d_k, s_len), lambda b, qt, s: (b, 0, 0)),
        pl.BlockSpec((bh_tile, s_len, d_v), lambda b, qt, s: (b, 0, 0)),
    ]
    inputs = [qf, kf, vf]
    block_bytes = (_nbytes((bh_tile, q_tile, d_k), q.dtype)
                   + _nbytes((bh_tile, d_k, s_len), k.dtype)
                   + _nbytes((bh_tile, s_len, d_v), v.dtype))

    if has_prev:
        prevf = prev.reshape(BH, q_len, s_len)
        in_specs.append(pl.BlockSpec((bh_tile, q_tile, s_len),
                                     lambda b, qt, s: (b, qt, 0)))
        inputs.append(prevf)
        block_bytes += _nbytes((bh_tile, q_tile, s_len), prevf.dtype)

    if has_mask:
        am = attn_mask.reshape(attn_mask.shape[-2], attn_mask.shape[-1])
        if am.dtype == jnp.bool_:
            mask_bias = jnp.where(am, neg_inf, jnp.float32(0.0))
        else:
            mask_bias = am.astype(jnp.float32)
        mask_bias = mask_bias[None]                                   # (1, q_len, s_len)
        in_specs.append(pl.BlockSpec((1, q_tile, s_len),
                                     lambda b, qt, s: (0, qt, 0)))
        inputs.append(mask_bias)
        block_bytes += _nbytes((1, q_tile, s_len), jnp.float32)

    if has_kpm:
        kpm_bool = key_padding_mask.astype(jnp.bool_)
        kpm_bias = jnp.where(kpm_bool, neg_inf, jnp.float32(0.0))     # (bs, s_len)
        kpm_bias = jnp.broadcast_to(kpm_bias[:, None, :], (bs, n_heads, s_len))
        kpm_bias = kpm_bias.reshape(BH, 1, s_len)
        in_specs.append(pl.BlockSpec((bh_tile, 1, s_len),
                                     lambda b, qt, s: (b, 0, 0)))
        inputs.append(kpm_bias)
        block_bytes += _nbytes((bh_tile, 1, s_len), jnp.float32)

    out_specs = [
        pl.BlockSpec((bh_tile, q_tile, d_v), lambda b, qt, s: (b, qt, 0)),
        pl.BlockSpec((bh_tile, q_tile, s_len), lambda b, qt, s: (b, qt, 0)),
    ]
    out_shape = [
        jax.ShapeDtypeStruct((BH, q_len, d_v), q.dtype),
        jax.ShapeDtypeStruct((BH, q_len, s_len), q.dtype),
    ]
    block_bytes += (_nbytes((bh_tile, q_tile, d_v), q.dtype)
                    + _nbytes((bh_tile, q_tile, s_len), q.dtype))
    if res_attention:
        out_specs.append(pl.BlockSpec((bh_tile, q_tile, s_len),
                                      lambda b, qt, s: (b, qt, 0)))
        out_shape.append(jax.ShapeDtypeStruct((BH, q_len, s_len), q.dtype))
        block_bytes += _nbytes((bh_tile, q_tile, s_len), q.dtype)

    # Double-buffered blocks + slack, clamped to stay safe on v5e (16 MiB default
    # scoped VMEM) and v7x (64 MiB physical VMEM).
    vmem_limit = int(min(max(2 * block_bytes + (2 << 20), 16 << 20), 48 << 20))

    kernel = functools.partial(_sdpa_kernel, has_prev, has_mask, has_kpm,
                               res_attention)

    results = pl.pallas_call(
        kernel,
        grid_spec=pltpu.PrefetchScalarGridSpec(
            num_scalar_prefetch=1,            # `scale` lands in SMEM
            grid=grid,
            in_specs=in_specs,
            out_specs=tuple(out_specs),
        ),
        out_shape=tuple(out_shape),
        compiler_params=pltpu.CompilerParams(
            dimension_semantics=("parallel", "parallel"),
            vmem_limit_bytes=vmem_limit),
    )(scale_arr, *inputs)

    if res_attention:
        out_f, attn_f, scores_f = results
    else:
        out_f, attn_f = results

    output = out_f.reshape(bs, n_heads, q_len, d_v)
    attn = attn_f.reshape(bs, n_heads, q_len, s_len)
    if res_attention:
        scores = scores_f.reshape(bs, n_heads, q_len, s_len)
        return output, attn, scores
    return output, attn


# ----------------------------------------------------------------------------- reference
def _reference(q, k, v, scale, prev, key_padding_mask, attn_mask):
    neg_inf = jnp.float32(float("-inf"))
    scores = jnp.einsum("bhqd,bhds->bhqs", q, k) * scale
    if prev is not None:
        scores = scores + prev
    if attn_mask is not None:
        scores = jnp.where(attn_mask[None, None, ...], neg_inf, scores)
    if key_padding_mask is not None:
        scores = jnp.where(key_padding_mask[:, None, None, :], neg_inf, scores)
    attn = jax.nn.softmax(scores, axis=-1)
    out = jnp.einsum("bhqs,bhsv->bhqv", attn, v)
    return out, attn, scores


# ----------------------------------------------------------------------------- demo / test
if __name__ == "__main__":
    # Module hyper-params (deterministic, synthetic).
    d_model, n_heads = 32, 4
    head_dim = d_model // n_heads               # d_k = d_v = 8
    scale = head_dim ** (-0.5)                  # nn.Parameter init (lsa=False)

    bs, q_len, s_len, d_k, d_v = 2, 16, 16, head_dim, head_dim

    key = jax.random.PRNGKey(0)
    kq, kk, kv, kp = jax.random.split(key, 4)
    q = jax.random.normal(kq, (bs, n_heads, q_len, d_k), jnp.float32)
    k = jax.random.normal(kk, (bs, n_heads, d_k, s_len), jnp.float32)
    v = jax.random.normal(kv, (bs, n_heads, s_len, d_v), jnp.float32)
    prev = 0.1 * jax.random.normal(kp, (bs, n_heads, q_len, s_len), jnp.float32)

    # Causal boolean attn_mask [q_len, s_len] and a key_padding_mask [bs, s_len].
    attn_mask = jnp.triu(jnp.ones((q_len, s_len), jnp.bool_), k=1)
    key_padding_mask = jnp.zeros((bs, s_len), jnp.bool_).at[0, -1].set(True)

    # --- full path: prev + both masks, res_attention=True (scores emitted) ---
    out, attn, scores = scaled_dot_product_attention(
        q, k, v, scale, prev=prev, key_padding_mask=key_padding_mask,
        attn_mask=attn_mask, res_attention=True)
    jax.block_until_ready((out, attn, scores))

    ref_out, ref_attn, ref_scores = _reference(
        q, k, v, scale, prev, key_padding_mask, attn_mask)

    assert jnp.allclose(out, ref_out, atol=2e-3, rtol=2e-3)
    assert jnp.allclose(attn, ref_attn, atol=2e-3, rtol=2e-3)
    # scores contain -inf at masked positions in both implementations
    finite = jnp.isfinite(ref_scores)
    assert bool(jnp.all(jnp.isfinite(scores) == finite))
    assert jnp.allclose(jnp.where(finite, scores, 0.0),
                        jnp.where(finite, ref_scores, 0.0), atol=1e-4, rtol=1e-4)

    # --- lean path: no prev / masks, res_attention=False (no scores written) ---
    out2, attn2 = scaled_dot_product_attention(q, k, v, scale)
    jax.block_until_ready((out2, attn2))
    ref_out2, ref_attn2, _ = _reference(q, k, v, scale, None, None, None)
    assert jnp.allclose(out2, ref_out2, atol=2e-3, rtol=2e-3)
    assert jnp.allclose(attn2, ref_attn2, atol=2e-3, rtol=2e-3)

    print("KERNEL_OK")
</pallas_src>

<mosaic_0001>
module attributes {stable_mosaic.version = 11 : i64} {
  func.func @_sdpa_kernel(%arg0: i32, %arg1: i32, %arg2: memref<1xf32, #tpu.memory_space<smem>>, %arg3: memref<4x16x8xf32, #tpu.memory_space<vmem>>, %arg4: memref<4x8x16xf32, #tpu.memory_space<vmem>>, %arg5: memref<4x16x8xf32, #tpu.memory_space<vmem>>, %arg6: memref<4x16x16xf32, #tpu.memory_space<vmem>>, %arg7: memref<1x16x16xf32, #tpu.memory_space<vmem>>, %arg8: memref<4x1x16xf32, #tpu.memory_space<vmem>>, %arg9: memref<4x16x8xf32, #tpu.memory_space<vmem>>, %arg10: memref<4x16x16xf32, #tpu.memory_space<vmem>>, %arg11: memref<4x16x16xf32, #tpu.memory_space<vmem>>) attributes {dimension_semantics = [#tpu.dimension_semantics<parallel>, #tpu.dimension_semantics<parallel>], iteration_bounds = array<i64: 2, 1>, scalar_prefetch = 1 : i64, scratch_operands = 0 : i64, tpu.core_type = #tpu.core_type<tc>, window_params = [{transform_indices = @transform_0, window_bounds = array<i64: 4, 16, 8>}, {transform_indices = @transform_1, window_bounds = array<i64: 4, 8, 16>}, {transform_indices = @transform_2, window_bounds = array<i64: 4, 16, 8>}, {transform_indices = @transform_3, window_bounds = array<i64: 4, 16, 16>}, {transform_indices = @transform_4, window_bounds = array<i64: 1, 16, 16>}, {transform_indices = @transform_5, window_bounds = array<i64: 4, 1, 16>}, {transform_indices = @transform_6, window_bounds = array<i64: 4, 16, 8>}, {transform_indices = @transform_7, window_bounds = array<i64: 4, 16, 16>}, {transform_indices = @transform_8, window_bounds = array<i64: 4, 16, 16>}]} {
    %c0 = arith.constant 0 : index
    %0 = memref.load %arg2[%c0] : memref<1xf32, #tpu.memory_space<smem>>
    %c0_0 = arith.constant 0 : index
    %c0_1 = arith.constant 0 : index
    %c0_2 = arith.constant 0 : index
    %1 = vector.load %arg3[%c0_0, %c0_1, %c0_2] : memref<4x16x8xf32, #tpu.memory_space<vmem>>, vector<4x16x8xf32>
    %2 = vector.broadcast %0 : f32 to vector<4x16x8xf32>
    %3 = arith.mulf %1, %2 : vector<4x16x8xf32>
    %c0_3 = arith.constant 0 : index
    %c0_4 = arith.constant 0 : index
    %c0_5 = arith.constant 0 : index
    %4 = vector.load %arg4[%c0_3, %c0_4, %c0_5] : memref<4x8x16xf32, #tpu.memory_space<vmem>>, vector<4x8x16xf32>
    %c0_6 = arith.constant 0 : index
    %c0_7 = arith.constant 0 : index
    %c0_8 = arith.constant 0 : index
    %5 = vector.load %arg5[%c0_6, %c0_7, %c0_8] : memref<4x16x8xf32, #tpu.memory_space<vmem>>, vector<4x16x8xf32>
    "tpu.trace_start"() <{level = 10 : i32, message = "bqd,bds->bqs"}> : () -> ()
    %cst = arith.constant dense<0.000000e+00> : vector<4x16x16xf32>
    %6 = tpu.matmul %3, %4, %cst {dimension_numbers = #tpu.dot_dimension_numbers<[2], [1], [1], [2], [0, 0, 0, 1, 1, 2], [0], [0]>} : vector<4x16x8xf32>, vector<4x8x16xf32>, vector<4x16x16xf32> -> vector<4x16x16xf32>
    "tpu.trace_stop"() : () -> ()
    %c0_9 = arith.constant 0 : index
    %c0_10 = arith.constant 0 : index
    %c0_11 = arith.constant 0 : index
    %7 = vector.load %arg6[%c0_9, %c0_10, %c0_11] : memref<4x16x16xf32, #tpu.memory_space<vmem>>, vector<4x16x16xf32>
    %8 = arith.addf %6, %7 : vector<4x16x16xf32>
    %c0_12 = arith.constant 0 : index
    %c0_13 = arith.constant 0 : index
    %c0_14 = arith.constant 0 : index
    %9 = vector.load %arg7[%c0_12, %c0_13, %c0_14] : memref<1x16x16xf32, #tpu.memory_space<vmem>>, vector<1x16x16xf32>
    %10 = vector.broadcast %9 : vector<1x16x16xf32> to vector<4x16x16xf32>
    %11 = arith.addf %8, %10 : vector<4x16x16xf32>
    %c0_15 = arith.constant 0 : index
    %c0_16 = arith.constant 0 : index
    %c0_17 = arith.constant 0 : index
    %12 = vector.load %arg8[%c0_15, %c0_16, %c0_17] : memref<4x1x16xf32, #tpu.memory_space<vmem>>, vector<4x1x16xf32>
    %13 = vector.broadcast %12 : vector<4x1x16xf32> to vector<4x16x16xf32>
    %14 = arith.addf %11, %13 : vector<4x16x16xf32>
    %c0_18 = arith.constant 0 : index
    %c0_19 = arith.constant 0 : index
    %c0_20 = arith.constant 0 : index
    %15 = vector.load %arg11[%c0_18, %c0_19, %c0_20] : memref<4x16x16xf32, #tpu.memory_space<vmem>>, vector<4x16x16xf32>
    tpu.vector_store %arg11[%c0_18, %c0_19, %c0_20], %14 {strides = array<i32>} : memref<4x16x16xf32, #tpu.memory_space<vmem>>, vector<4x16x16xf32>,
    %cst_21 = arith.constant dense<0xFF800000> : vector<4x16xf32>
    %16 = vector.multi_reduction <maximumf>, %14, %cst_21 [2] : vector<4x16x16xf32> to vector<4x16xf32>
    %17 = vector.shape_cast %16 : vector<4x16xf32> to vector<4x16x1xf32>
    %18 = vector.broadcast %17 : vector<4x16x1xf32> to vector<4x16x16xf32>
    %19 = arith.subf %14, %18 : vector<4x16x16xf32>
    %20 = math.exp %19 : vector<4x16x16xf32>
    %cst_22 = arith.constant dense<0.000000e+00> : vector<4x16xf32>
    %21 = vector.multi_reduction <add>, %20, %cst_22 [2] : vector<4x16x16xf32> to vector<4x16xf32>
    %22 = vector.shape_cast %21 : vector<4x16xf32> to vector<4x16x1xf32>
    %23 = tpu.reciprocal %22 {approx = true} : vector<4x16x1xf32> -> vector<4x16x1xf32>
    %24 = vector.broadcast %23 : vector<4x16x1xf32> to vector<4x16x16xf32>
    %25 = arith.mulf %20, %24 : vector<4x16x16xf32>
    %c0_23 = arith.constant 0 : index
    %c0_24 = arith.constant 0 : index
    %c0_25 = arith.constant 0 : index
    %26 = vector.load %arg10[%c0_23, %c0_24, %c0_25] : memref<4x16x16xf32, #tpu.memory_space<vmem>>, vector<4x16x16xf32>
    tpu.vector_store %arg10[%c0_23, %c0_24, %c0_25], %25 {strides = array<i32>} : memref<4x16x16xf32, #tpu.memory_space<vmem>>, vector<4x16x16xf32>,
    "tpu.trace_start"() <{level = 10 : i32, message = "bqs,bsv->bqv"}> : () -> ()
    %cst_26 = arith.constant dense<0.000000e+00> : vector<4x16x8xf32>
    %27 = tpu.matmul %25, %5, %cst_26 {dimension_numbers = #tpu.dot_dimension_numbers<[2], [1], [1], [2], [0, 0, 0, 1, 1, 2], [0], [0]>} : vector<4x16x16xf32>, vector<4x16x8xf32>, vector<4x16x8xf32> -> vector<4x16x8xf32>
    "tpu.trace_stop"() : () -> ()
    %c0_27 = arith.constant 0 : index
    %c0_28 = arith.constant 0 : index
    %c0_29 = arith.constant 0 : index
    %28 = vector.load %arg9[%c0_27, %c0_28, %c0_29] : memref<4x16x8xf32, #tpu.memory_space<vmem>>, vector<4x16x8xf32>
    tpu.vector_store %arg9[%c0_27, %c0_28, %c0_29], %27 {strides = array<i32>} : memref<4x16x8xf32, #tpu.memory_space<vmem>>, vector<4x16x8xf32>,
    return
  }
  func.func @transform_0(%arg0: i32, %arg1: i32, %arg2: memref<1xf32, #tpu.memory_space<smem>>) -> (i32, i32, i32) {
    %c0_i32 = arith.constant 0 : i32
    %c0_i32_0 = arith.constant 0 : i32
    return %arg0, %arg1, %c0_i32 : i32, i32, i32
  }
  func.func @transform_1(%arg0: i32, %arg1: i32, %arg2: memref<1xf32, #tpu.memory_space<smem>>) -> (i32, i32, i32) {
    %c0_i32 = arith.constant 0 : i32
    %c0_i32_0 = arith.constant 0 : i32
    %c0_i32_1 = arith.constant 0 : i32
    return %arg0, %c0_i32, %c0_i32_0 : i32, i32, i32
  }
  func.func @transform_2(%arg0: i32, %arg1: i32, %arg2: memref<1xf32, #tpu.memory_space<smem>>) -> (i32, i32, i32) {
    %c0_i32 = arith.constant 0 : i32
    %c0_i32_0 = arith.constant 0 : i32
    %c0_i32_1 = arith.constant 0 : i32
    return %arg0, %c0_i32, %c0_i32_0 : i32, i32, i32
  }
  func.func @transform_3(%arg0: i32, %arg1: i32, %arg2: memref<1xf32, #tpu.memory_space<smem>>) -> (i32, i32, i32) {
    %c0_i32 = arith.constant 0 : i32
    %c0_i32_0 = arith.constant 0 : i32
    return %arg0, %arg1, %c0_i32 : i32, i32, i32
  }
  func.func @transform_4(%arg0: i32, %arg1: i32, %arg2: memref<1xf32, #tpu.memory_space<smem>>) -> (i32, i32, i32) {
    %c0_i32 = arith.constant 0 : i32
    %c0_i32_0 = arith.constant 0 : i32
    %c0_i32_1 = arith.constant 0 : i32
    return %c0_i32, %arg1, %c0_i32_0 : i32, i32, i32
  }
  func.func @transform_5(%arg0: i32, %arg1: i32, %arg2: memref<1xf32, #tpu.memory_space<smem>>) -> (i32, i32, i32) {
    %c0_i32 = arith.constant 0 : i32
    %c0_i32_0 = arith.constant 0 : i32
    %c0_i32_1 = arith.constant 0 : i32
    return %arg0, %c0_i32, %c0_i32_0 : i32, i32, i32
  }
  func.func @transform_6(%arg0: i32, %arg1: i32, %arg2: memref<1xf32, #tpu.memory_space<smem>>) -> (i32, i32, i32) {
    %c0_i32 = arith.constant 0 : i32
    %c0_i32_0 = arith.constant 0 : i32
    return %arg0, %arg1, %c0_i32 : i32, i32, i32
  }
  func.func @transform_7(%arg0: i32, %arg1: i32, %arg2: memref<1xf32, #tpu.memory_space<smem>>) -> (i32, i32, i32) {
    %c0_i32 = arith.constant 0 : i32
    %c0_i32_0 = arith.constant 0 : i32
    return %arg0, %arg1, %c0_i32 : i32, i32, i32
  }
  func.func @transform_8(%arg0: i32, %arg1: i32, %arg2: memref<1xf32, #tpu.memory_space<smem>>) -> (i32, i32, i32) {
    %c0_i32 = arith.constant 0 : i32
    %c0_i32_0 = arith.constant 0 : i32
    return %arg0, %arg1, %c0_i32 : i32, i32, i32
  }
}

</mosaic_0001>

<llo_original>
// kernel: tpu_custom_call.1
$region0: #{tpu_custom_call.1}
  #allocation0 [shape = 'u32[]', space=smem, size = 0x4, offset = 0x4, fixed_abs, tag = 'smem constant byte address 0x4 - core index']
  #allocation1 [shape = 'u32[144,128]{1,0:T(1,128)}', space=vmem, size = 0x12000, scoped, tag = 'internal scratch']
  #allocation2 [shape = 's32[1]{0}', space=sflag, size = 0x4, scoped, tag = 'scoped memory for tpu_custom_call.1']
  #allocation3 [shape = 'f32[1]{0:T(128)S(6)}', space=smem, size = 0x200, scoped, tag = 'prefetched SMEM operand 0']
  %s0 = inlined_call_operand.<no memory space> [shape: f32[1], index: 0, kind: input, shape index: {}]
  %s1 = inlined_call_operand.vmem [shape: f32[8,16,8], index: 1, kind: input, shape index: {}]
  %s2 = inlined_call_operand.vmem [shape: f32[8,8,16], index: 2, kind: input, shape index: {}]
  %s3 = inlined_call_operand.vmem [shape: f32[8,16,8], index: 3, kind: input, shape index: {}]
  %s4 = inlined_call_operand.vmem [shape: f32[8,16,16], index: 4, kind: input, shape index: {}]
  %s5 = inlined_call_operand.vmem [shape: f32[1,16,16], index: 5, kind: input, shape index: {}]
  %s6 = inlined_call_operand.vmem [shape: f32[8,1,16], index: 6, kind: input, shape index: {}]
  %s7 = inlined_call_operand.vmem [shape: f32[8,16,8], index: 7, kind: output, shape index: {0}]
  %s8 = inlined_call_operand.hbm [shape: f32[8,16,16], index: 8, kind: output, shape index: {1}]
  %s9 = inlined_call_operand.hbm [shape: f32[8,16,16], index: 9, kind: output, shape index: {2}]
  %10 = xla_tuple %s7, %s8, %s9
  %s11 = sld [smem:[#allocation0]]
  $region73: #{tpu_custom_call.1} parent=0
    _
  %s13 = ssub.s32 1, %s11
  %s14 = scalar_select 0, %s13, %s11
  %15 = sst [smem:[#allocation3]] %s0
  $region1: #{tpu_custom_call.1} parent=0
    #allocation4 [shape = 'u8[65536]{0}', space=vmem, size = 0x10000, scoped, tag = 'output window, operand 1']
    #allocation5 [shape = 's32[2]{0}', space=sflag, size = 0x8, scoped, tag = 'scoped memory for tpu_custom_call.1']
    #allocation6 [shape = 'u8[65536]{0}', space=vmem, size = 0x10000, scoped, tag = 'output window, operand 2']
    #allocation7 [shape = 's32[2]{0}', space=sflag, size = 0x8, scoped, tag = 'scoped memory for tpu_custom_call.1']
    %16 = vsyncpa [#allocation5], 0
    %s17 = scalar_lea.sflag [#allocation5], 1
    %18 = vsyncpa %s17, 0
    %19 = vsyncpa [#allocation7], 0
    %s20 = scalar_lea.sflag [#allocation7], 1
    %21 = vsyncpa %s20, 0
    loop: start=0, step=1, limit=4
    $region2: #{tpu_custom_call.1} parent=1 // loop_pre_header
      _
    $region3: #{tpu_custom_call.1} parent=1 // loop_header
      %s23 = sphi 0, %s27
      %p24 = scmp.ge.s32.totalorder %s23, 4
      %s30 = sphi 0, %s42
      %s31 = sphi 0, %s38
      %s32 = sphi 0, %s30
      %s33 = sphi 0, %s31
      %s34 = sphi 0, %s32
      %s35 = sphi 0, %s33
      %s47 = sphi 0, %s49
      %s50 = sphi 0, %s47
      %s51 = sphi 0, %s50
      %s67 = sphi 0, %s51
      %s73 = sphi 0, %s75
      %s76 = sphi 0, %s73
      %s77 = sphi 0, %s76
      %s93 = sphi 0, %s77
      %s99 = sphi 0, %s101
      %s102 = sphi 0, %s99
      %s103 = sphi 0, %s102
      %s119 = sphi 0, %s103
      %s127 = sphi 0, %s129
      %s130 = sphi 0, %s127
      %s131 = sphi 0, %s130
      %s147 = sphi 0, %s131
      %s153 = sphi 0, %s155
      %s156 = sphi 0, %s153
      %s157 = sphi 0, %s156
      %s173 = sphi 0, %s157
      %s179 = sphi 0, %s181
      %s182 = sphi 0, %s179
      %s183 = sphi 0, %s182
      %s199 = sphi 0, %s183
      %s207 = sphi 0, %s209
      %s210 = sphi 0, %s207
      %s211 = sphi 0, %s210
      %s227 = sphi 0, %s211
      %s235 = sphi 0, %s237
      %s238 = sphi 0, %s235
      %s239 = sphi 0, %s238
      %s255 = sphi 0, %s239
      %s263 = sphi 0, %s265
      %s266 = sphi 0, %s263
      %s267 = sphi 0, %s266
      %s283 = sphi 0, %s267
    $region4: #{tpu_custom_call.1} parent=1 // loop_header_branch
      %26 = sbr.rel (%p24) target = $region8
    $region5: #{tpu_custom_call.1} parent=1 // loop_body
      %s28 = ssub.s32 %s23, 1
      %s29 = ssub.s32 %s23, 2
      %s36 = sadd.s32 1, %s31
      %p37 = scmp.ge.s32.totalorder %s36, 1
      %s38 = scalar_select %p37, 0, %s36
      %s39 = sadd.s32 1, %s30
      %s40 = scalar_select %p37, %s39, %s30
      %p41 = scmp.ge.s32.totalorder %s40, 2
      %s42 = scalar_select %p41, 0, %s40
      %s43 = ssub.s32 %s30, %s42
      %s44 = ssub.s32 %s31, %s38
      %s45 = sor.u32 %s43, %s44
      %p46 = scmp.eq.s32.totalorder %s45, 0
      %s48 = sadd.s32 %s47, 1
      %s49 = scalar_select %p46, %s47, %s48
      %p52 = pneg %p46
      %p53 = scmp.eq.s32.totalorder %s23, 1
      %p54 = por %p52, %p53
      %p55 = scmp.ne.s32.totalorder %s47, %s50
      %p56 = scmp.eq.s32.totalorder %s23, 0
      %p57 = por %p55, %p56
      %p58 = scmp.ne.s32.totalorder %s47, %s50
      %p59 = scmp.eq.s32.totalorder %s28, 1
      %p60 = por %p58, %p59
      %p61 = scmp.ne.s32.totalorder %s50, %s51
      %p62 = scmp.eq.s32.totalorder %s28, 0
      %p63 = por %p61, %p62
      %p64 = scmp.ne.s32.totalorder %s50, %s51
      %p65 = scmp.eq.s32.totalorder %s29, 1
      %p66 = por %p64, %p65
      %p68 = scmp.ne.s32.totalorder %s51, %s67
      %p69 = scmp.eq.s32.totalorder %s29, 0
      %p70 = por %p68, %p69
      %s71 = ssub.s32 %s30, %s42
      %p72 = scmp.eq.s32.totalorder %s71, 0
      %s74 = sadd.s32 %s73, 1
      %s75 = scalar_select %p72, %s73, %s74
      %p78 = pneg %p72
      %p79 = scmp.eq.s32.totalorder %s23, 1
      %p80 = por %p78, %p79
      %p81 = scmp.ne.s32.totalorder %s73, %s76
      %p82 = scmp.eq.s32.totalorder %s23, 0
      %p83 = por %p81, %p82
      %p84 = scmp.ne.s32.totalorder %s73, %s76
      %p85 = scmp.eq.s32.totalorder %s28, 1
      %p86 = por %p84, %p85
      %p87 = scmp.ne.s32.totalorder %s76, %s77
      %p88 = scmp.eq.s32.totalorder %s28, 0
      %p89 = por %p87, %p88
      %p90 = scmp.ne.s32.totalorder %s76, %s77
      %p91 = scmp.eq.s32.totalorder %s29, 1
      %p92 = por %p90, %p91
      %p94 = scmp.ne.s32.totalorder %s77, %s93
      %p95 = scmp.eq.s32.totalorder %s29, 0
      %p96 = por %p94, %p95
      %s97 = ssub.s32 %s30, %s42
      %p98 = scmp.eq.s32.totalorder %s97, 0
      %s100 = sadd.s32 %s99, 1
      %s101 = scalar_select %p98, %s99, %s100
      %p104 = pneg %p98
      %p105 = scmp.eq.s32.totalorder %s23, 1
      %p106 = por %p104, %p105
      %p107 = scmp.ne.s32.totalorder %s99, %s102
      %p108 = scmp.eq.s32.totalorder %s23, 0
      %p109 = por %p107, %p108
      %p110 = scmp.ne.s32.totalorder %s99, %s102
      %p111 = scmp.eq.s32.totalorder %s28, 1
      %p112 = por %p110, %p111
      %p113 = scmp.ne.s32.totalorder %s102, %s103
      %p114 = scmp.eq.s32.totalorder %s28, 0
      %p115 = por %p113, %p114
      %p116 = scmp.ne.s32.totalorder %s102, %s103
      %p117 = scmp.eq.s32.totalorder %s29, 1
      %p118 = por %p116, %p117
      %p120 = scmp.ne.s32.totalorder %s103, %s119
      %p121 = scmp.eq.s32.totalorder %s29, 0
      %p122 = por %p120, %p121
      %s123 = ssub.s32 %s30, %s42
      %s124 = ssub.s32 %s31, %s38
      %s125 = sor.u32 %s123, %s124
      %p126 = scmp.eq.s32.totalorder %s125, 0
      %s128 = sadd.s32 %s127, 1
      %s129 = scalar_select %p126, %s127, %s128
      %p132 = pneg %p126
      %p133 = scmp.eq.s32.totalorder %s23, 1
      %p134 = por %p132, %p133
      %p135 = scmp.ne.s32.totalorder %s127, %s130
      %p136 = scmp.eq.s32.totalorder %s23, 0
      %p137 = por %p135, %p136
      %p138 = scmp.ne.s32.totalorder %s127, %s130
      %p139 = scmp.eq.s32.totalorder %s28, 1
      %p140 = por %p138, %p139
      %p141 = scmp.ne.s32.totalorder %s130, %s131
      %p142 = scmp.eq.s32.totalorder %s28, 0
      %p143 = por %p141, %p142
      %p144 = scmp.ne.s32.totalorder %s130, %s131
      %p145 = scmp.eq.s32.totalorder %s29, 1
      %p146 = por %p144, %p145
      %p148 = scmp.ne.s32.totalorder %s131, %s147
      %p149 = scmp.eq.s32.totalorder %s29, 0
      %p150 = por %p148, %p149
      %s151 = ssub.s32 %s31, %s38
      %p152 = scmp.eq.s32.totalorder %s151, 0
      %s154 = sadd.s32 %s153, 1
      %s155 = scalar_select %p152, %s153, %s154
      %p158 = pneg %p152
      %p159 = scmp.eq.s32.totalorder %s23, 1
      %p160 = por %p158, %p159
      %p161 = scmp.ne.s32.totalorder %s153, %s156
      %p162 = scmp.eq.s32.totalorder %s23, 0
      %p163 = por %p161, %p162
      %p164 = scmp.ne.s32.totalorder %s153, %s156
      %p165 = scmp.eq.s32.totalorder %s28, 1
      %p166 = por %p164, %p165
      %p167 = scmp.ne.s32.totalorder %s156, %s157
      %p168 = scmp.eq.s32.totalorder %s28, 0
      %p169 = por %p167, %p168
      %p170 = scmp.ne.s32.totalorder %s156, %s157
      %p171 = scmp.eq.s32.totalorder %s29, 1
      %p172 = por %p170, %p171
      %p174 = scmp.ne.s32.totalorder %s157, %s173
      %p175 = scmp.eq.s32.totalorder %s29, 0
      %p176 = por %p174, %p175
      %s177 = ssub.s32 %s30, %s42
      %p178 = scmp.eq.s32.totalorder %s177, 0
      %s180 = sadd.s32 %s179, 1
      %s181 = scalar_select %p178, %s179, %s180
      %p184 = pneg %p178
      %p185 = scmp.eq.s32.totalorder %s23, 1
      %p186 = por %p184, %p185
      %p187 = scmp.ne.s32.totalorder %s179, %s182
      %p188 = scmp.eq.s32.totalorder %s23, 0
      %p189 = por %p187, %p188
      %p190 = scmp.ne.s32.totalorder %s179, %s182
      %p191 = scmp.eq.s32.totalorder %s28, 1
      %p192 = por %p190, %p191
      %p193 = scmp.ne.s32.totalorder %s182, %s183
      %p194 = scmp.eq.s32.totalorder %s28, 0
      %p195 = por %p193, %p194
      %p196 = scmp.ne.s32.totalorder %s182, %s183
      %p197 = scmp.eq.s32.totalorder %s29, 1
      %p198 = por %p196, %p197
      %p200 = scmp.ne.s32.totalorder %s183, %s199
      %p201 = scmp.eq.s32.totalorder %s29, 0
      %p202 = por %p200, %p201
      %s203 = ssub.s32 %s30, %s42
      %s204 = ssub.s32 %s31, %s38
      %s205 = sor.u32 %s203, %s204
      %p206 = scmp.eq.s32.totalorder %s205, 0
      %s208 = sadd.s32 %s207, 1
      %s209 = scalar_select %p206, %s207, %s208
      %p212 = pneg %p206
      %p213 = scmp.eq.s32.totalorder %s23, 1
      %p214 = por %p212, %p213
      %p215 = scmp.ne.s32.totalorder %s207, %s210
      %p216 = scmp.eq.s32.totalorder %s23, 0
      %p217 = por %p215, %p216
      %p218 = scmp.ne.s32.totalorder %s207, %s210
      %p219 = scmp.eq.s32.totalorder %s28, 1
      %p220 = por %p218, %p219
      %p221 = scmp.ne.s32.totalorder %s210, %s211
      %p222 = scmp.eq.s32.totalorder %s28, 0
      %p223 = por %p221, %p222
      %p224 = scmp.ne.s32.totalorder %s210, %s211
      %p225 = scmp.eq.s32.totalorder %s29, 1
      %p226 = por %p224, %p225
      %p228 = scmp.ne.s32.totalorder %s211, %s227
      %p229 = scmp.eq.s32.totalorder %s29, 0
      %p230 = por %p228, %p229
      %s231 = ssub.s32 %s30, %s42
      %s232 = ssub.s32 %s31, %s38
      %s233 = sor.u32 %s231, %s232
      %p234 = scmp.eq.s32.totalorder %s233, 0
      %s236 = sadd.s32 %s235, 1
      %s237 = scalar_select %p234, %s235, %s236
      %p240 = pneg %p234
      %p241 = scmp.eq.s32.totalorder %s23, 1
      %p242 = por %p240, %p241
      %p243 = scmp.ne.s32.totalorder %s235, %s238
      %p244 = scmp.eq.s32.totalorder %s23, 0
      %p245 = por %p243, %p244
      %p246 = scmp.ne.s32.totalorder %s235, %s238
      %p247 = scmp.eq.s32.totalorder %s28, 1
      %p248 = por %p246, %p247
      %p249 = scmp.ne.s32.totalorder %s238, %s239
      %p250 = scmp.eq.s32.totalorder %s28, 0
      %p251 = por %p249, %p250
      %p252 = scmp.ne.s32.totalorder %s238, %s239
      %p253 = scmp.eq.s32.totalorder %s29, 1
      %p254 = por %p252, %p253
      %p256 = scmp.ne.s32.totalorder %s239, %s255
      %p257 = scmp.eq.s32.totalorder %s29, 0
      %p258 = por %p256, %p257
      %s259 = ssub.s32 %s30, %s42
      %s260 = ssub.s32 %s31, %s38
      %s261 = sor.u32 %s259, %s260
      %p262 = scmp.eq.s32.totalorder %s261, 0
      %s264 = sadd.s32 %s263, 1
      %s265 = scalar_select %p262, %s263, %s264
      %p268 = pneg %p262
      %p269 = scmp.eq.s32.totalorder %s23, 1
      %p270 = por %p268, %p269
      %p271 = scmp.ne.s32.totalorder %s263, %s266
      %p272 = scmp.eq.s32.totalorder %s23, 0
      %p273 = por %p271, %p272
      %p274 = scmp.ne.s32.totalorder %s263, %s266
      %p275 = scmp.eq.s32.totalorder %s28, 1
      %p276 = por %p274, %p275
      %p277 = scmp.ne.s32.totalorder %s266, %s267
      %p278 = scmp.eq.s32.totalorder %s28, 0
      %p279 = por %p277, %p278
      %p280 = scmp.ne.s32.totalorder %s266, %s267
      %p281 = scmp.eq.s32.totalorder %s29, 1
      %p282 = por %p280, %p281
      %p284 = scmp.ne.s32.totalorder %s267, %s283
      %p285 = scmp.eq.s32.totalorder %s29, 0
      %p286 = por %p284, %p285
      %p287 = scmp.le.s32.totalorder 1, %s23
      %p288 = scmp.lt.s32.totalorder %s23, 3
      %p289 = pnand %p287, %p288
      %p290 = pneg %p289
      // Predicated region
      $region9: #{tpu_custom_call.1} parent=5 // pred_check
        _
      $region10: #{tpu_custom_call.1} parent=5 // pred_check_branch
        %292 = sbr.rel (%p289) target = $region12
      $region11: #{tpu_custom_call.1} parent=5 // pred_region
        %s293 = ssub.s32 %s23, 1
        // Predicated region
        $region13: #{tpu_custom_call.1} parent=11 // pred_check
          %p294 = pneg %p169
        $region14: #{tpu_custom_call.1} parent=11 // pred_check_branch
          %296 = sbr.rel (%p294) target = $region16
        $region15: #{tpu_custom_call.1} parent=11 // pred_region
          %s297 = smul.u32 2, %s33
          %p298 = scmp.lt.s32.totalorder %s297, 1
          %s299 = scalar_select %p298, %s297, 1
          %s300 = smul.addr %s299, 8
          %s301 = scalar_lea.vmem %s5, %s300
          %s302 = smul.u32 2, %s33
        $region16: #{tpu_custom_call.1} parent=11 // pred_fallthru
          _
      $region12: #{tpu_custom_call.1} parent=5 // pred_fallthru
        _
      %p303 = scmp.lt.s32.totalorder %s23, 2
      // Predicated region
      $region17: #{tpu_custom_call.1} parent=5 // pred_check
        %p304 = pneg %p303
      $region18: #{tpu_custom_call.1} parent=5 // pred_check_branch
        %306 = sbr.rel (%p304) target = $region20
      $region19: #{tpu_custom_call.1} parent=5 // pred_region
        // Predicated region
        $region21: #{tpu_custom_call.1} parent=19 // pred_check
          %p307 = pneg %p57
        $region22: #{tpu_custom_call.1} parent=19 // pred_check_branch
          %309 = sbr.rel (%p307) target = $region24
        $region23: #{tpu_custom_call.1} parent=19 // pred_region
          %s310 = smul.u32 4, %s30
          %s311 = smul.u32 2, %s31
          %p312 = scmp.lt.s32.totalorder %s310, 7
          %s313 = scalar_select %p312, %s310, 7
          %p314 = scmp.lt.s32.totalorder %s311, 1
          %s315 = scalar_select %p314, %s311, 1
          %s316 = smul.addr %s313, 2
          %s317 = sadd.s32 %s315, %s316
          %s318 = smul.addr %s317, 8
          %s319 = scalar_lea.vmem %s1, %s318
          %s320 = smul.u32 4, %s30
          %s321 = smul.u32 2, %s31
        $region24: #{tpu_custom_call.1} parent=19 // pred_fallthru
          _
        // Predicated region
        $region25: #{tpu_custom_call.1} parent=19 // pred_check
          %p322 = pneg %p83
        $region26: #{tpu_custom_call.1} parent=19 // pred_check_branch
          %324 = sbr.rel (%p322) target = $region28
        $region27: #{tpu_custom_call.1} parent=19 // pred_region
          %s325 = smul.u32 4, %s30
          %p326 = scmp.lt.s32.totalorder %s325, 7
          %s327 = scalar_select %p326, %s325, 7
          %s328 = smul.addr %s327, 8
          %s329 = scalar_lea.vmem %s2, %s328
          %s330 = smul.u32 4, %s30
        $region28: #{tpu_custom_call.1} parent=19 // pred_fallthru
          _
        // Predicated region
        $region29: #{tpu_custom_call.1} parent=19 // pred_check
          %p331 = pneg %p109
        $region30: #{tpu_custom_call.1} parent=19 // pred_check_branch
          %333 = sbr.rel (%p331) target = $region32
        $region31: #{tpu_custom_call.1} parent=19 // pred_region
          %s334 = smul.u32 4, %s30
          %p335 = scmp.lt.s32.totalorder %s334, 7
          %s336 = scalar_select %p335, %s334, 7
          %s337 = smul.addr %s336, 2
          %s338 = smul.addr %s337, 8
          %s339 = scalar_lea.vmem %s3, %s338
          %s340 = smul.u32 4, %s30
        $region32: #{tpu_custom_call.1} parent=19 // pred_fallthru
          _
        // Predicated region
        $region33: #{tpu_custom_call.1} parent=19 // pred_check
          %p341 = pneg %p137
        $region34: #{tpu_custom_call.1} parent=19 // pred_check_branch
          %343 = sbr.rel (%p341) target = $region36
        $region35: #{tpu_custom_call.1} parent=19 // pred_region
          %s344 = smul.u32 4, %s30
          %s345 = smul.u32 2, %s31
          %p346 = scmp.lt.s32.totalorder %s344, 7
          %s347 = scalar_select %p346, %s344, 7
          %p348 = scmp.lt.s32.totalorder %s345, 1
          %s349 = scalar_select %p348, %s345, 1
          %s350 = smul.addr %s347, 2
          %s351 = sadd.s32 %s349, %s350
          %s352 = smul.addr %s351, 8
          %s353 = scalar_lea.vmem %s4, %s352
          %s354 = smul.u32 4, %s30
          %s355 = smul.u32 2, %s31
        $region36: #{tpu_custom_call.1} parent=19 // pred_fallthru
          _
        // Predicated region
        $region37: #{tpu_custom_call.1} parent=19 // pred_check
          %p356 = pneg %p189
        $region38: #{tpu_custom_call.1} parent=19 // pred_check_branch
          %358 = sbr.rel (%p356) target = $region40
        $region39: #{tpu_custom_call.1} parent=19 // pred_region
          %s359 = smul.u32 4, %s30
          %p360 = scmp.lt.s32.totalorder %s359, 7
          %s361 = scalar_select %p360, %s359, 7
          %s362 = scalar_lea.vmem %s6, %s361
          %s363 = smul.u32 4, %s30
        $region40: #{tpu_custom_call.1} parent=19 // pred_fallthru
          _
      $region20: #{tpu_custom_call.1} parent=5 // pred_fallthru
        _
      %p364 = scmp.le.s32.totalorder 1, %s23
      %p365 = scmp.lt.s32.totalorder %s23, 3
      %p366 = pnand %p364, %p365
      %p367 = pneg %p366
      // Predicated region
      $region41: #{tpu_custom_call.1} parent=5 // pred_check
        _
      $region42: #{tpu_custom_call.1} parent=5 // pred_check_branch
        %369 = sbr.rel (%p366) target = $region44
      $region43: #{tpu_custom_call.1} parent=5 // pred_region
        %s370 = ssub.s32 %s23, 1
        %s371 = smul.u32 4, %s32
        %s372 = smul.u32 2, %s33
        %p373 = scmp.lt.s32.totalorder %s371, 7
        %s374 = scalar_select %p373, %s371, 7
        %p375 = scmp.lt.s32.totalorder %s372, 1
        %s376 = scalar_select %p375, %s372, 1
        %s377 = smul.addr %s374, 2
        %s378 = sadd.s32 %s376, %s377
        %s379 = smul.addr %s378, 8
        %s380 = scalar_lea.vmem %s1, %s379
        %p381 = pneg %p63
        %p382 = pneg %p60
        %s383 = smul.u32 4, %s32
        %p384 = scmp.lt.s32.totalorder %s383, 7
        %s385 = scalar_select %p384, %s383, 7
        %s386 = smul.addr %s385, 8
        %s387 = scalar_lea.vmem %s2, %s386
        %p388 = pneg %p89
        %p389 = pneg %p86
        %s390 = smul.u32 4, %s32
        %p391 = scmp.lt.s32.totalorder %s390, 7
        %s392 = scalar_select %p391, %s390, 7
        %s393 = smul.addr %s392, 2
        %s394 = smul.addr %s393, 8
        %s395 = scalar_lea.vmem %s3, %s394
        %p396 = pneg %p115
        %p397 = pneg %p112
        %s398 = smul.u32 4, %s32
        %s399 = smul.u32 2, %s33
        %p400 = scmp.lt.s32.totalorder %s398, 7
        %s401 = scalar_select %p400, %s398, 7
        %p402 = scmp.lt.s32.totalorder %s399, 1
        %s403 = scalar_select %p402, %s399, 1
        %s404 = smul.addr %s401, 2
        %s405 = sadd.s32 %s403, %s404
        %s406 = smul.addr %s405, 8
        %s407 = scalar_lea.vmem %s4, %s406
        %p408 = pneg %p143
        %p409 = pneg %p140
        %s410 = smul.u32 2, %s33
        %p411 = scmp.lt.s32.totalorder %s410, 1
        %s412 = scalar_select %p411, %s410, 1
        %s413 = smul.addr %s412, 8
        %s414 = scalar_lea.vmem %s5, %s413
        %p415 = pneg %p169
        %p416 = pneg %p166
        %s417 = smul.u32 4, %s32
        %p418 = scmp.lt.s32.totalorder %s417, 7
        %s419 = scalar_select %p418, %s417, 7
        %s420 = scalar_lea.vmem %s6, %s419
        %p421 = pneg %p195
        %p422 = pneg %p192
        %p423 = pneg %p223
        %p424 = pneg %p220
        %s425 = smul.u32 4, %s32
        %s426 = smul.u32 2, %s33
        %p427 = scmp.lt.s32.totalorder %s425, 7
        %s428 = scalar_select %p427, %s425, 7
        %p429 = scmp.lt.s32.totalorder %s426, 1
        %s430 = scalar_select %p429, %s426, 1
        %s431 = smul.addr %s428, 2
        %s432 = sadd.s32 %s430, %s431
        %s433 = smul.addr %s432, 8
        %s434 = scalar_lea.vmem %s7, %s433
        %p435 = pneg %p251
        %p436 = pneg %p248
        %s437 = sand.u32 %s238, 1
        %s438 = scalar_lea.sflag [#allocation5], %s437
        %s439 = sand.u32 %s238, 1
        %s440 = smul.addr %s439, 64
        %s441 = scalar_lea.vmem [#allocation4], %s440
        %p442 = pneg %p279
        %p443 = pneg %p276
        %s444 = sand.u32 %s266, 1
        %s445 = scalar_lea.sflag [#allocation7], %s444
        %s446 = sand.u32 %s266, 1
        %s447 = smul.addr %s446, 64
        %s448 = scalar_lea.vmem [#allocation6], %s447
        %s449 = smul.u32 4, %s32
        %s450 = smul.u32 2, %s33
        %p451 = scmp.lt.s32.totalorder %s449, 7
        %s452 = scalar_select %p451, %s449, 7
        %p453 = scmp.lt.s32.totalorder %s450, 1
        %s454 = scalar_select %p453, %s450, 1
        %s455 = smul.addr %s452, 2
        %s456 = sadd.s32 %s454, %s455
        %s457 = smul.addr %s456, 8
        %s458 = scalar_lea.vmem %s1, %s457
        %s459 = smul.u32 4, %s32
        %s460 = smul.u32 2, %s33
        %s461 = smul.u32 4, %s32
        %p462 = scmp.lt.s32.totalorder %s461, 7
        %s463 = scalar_select %p462, %s461, 7
        %s464 = smul.addr %s463, 8
        %s465 = scalar_lea.vmem %s2, %s464
        %s466 = smul.u32 4, %s32
        %s467 = smul.u32 4, %s32
        %p468 = scmp.lt.s32.totalorder %s467, 7
        %s469 = scalar_select %p468, %s467, 7
        %s470 = smul.addr %s469, 2
        %s471 = smul.addr %s470, 8
        %s472 = scalar_lea.vmem %s3, %s471
        %s473 = smul.u32 4, %s32
        %s474 = smul.u32 4, %s32
        %s475 = smul.u32 2, %s33
        %p476 = scmp.lt.s32.totalorder %s474, 7
        %s477 = scalar_select %p476, %s474, 7
        %p478 = scmp.lt.s32.totalorder %s475, 1
        %s479 = scalar_select %p478, %s475, 1
        %s480 = smul.addr %s477, 2
        %s481 = sadd.s32 %s479, %s480
        %s482 = smul.addr %s481, 8
        %s483 = scalar_lea.vmem %s4, %s482
        %s484 = smul.u32 4, %s32
        %s485 = smul.u32 2, %s33
        %s486 = smul.u32 2, %s33
        %p487 = scmp.lt.s32.totalorder %s486, 1
        %s488 = scalar_select %p487, %s486, 1
        %s489 = smul.addr %s488, 8
        %s490 = scalar_lea.vmem %s5, %s489
        %s491 = smul.u32 2, %s33
        %s492 = smul.u32 4, %s32
        %p493 = scmp.lt.s32.totalorder %s492, 7
        %s494 = scalar_select %p493, %s492, 7
        %s495 = scalar_lea.vmem %s6, %s494
        %s496 = smul.u32 4, %s32
        %s497 = smul.u32 4, %s32
        %s498 = smul.u32 2, %s33
        %p499 = scmp.lt.s32.totalorder %s497, 7
        %s500 = scalar_select %p499, %s497, 7
        %p501 = scmp.lt.s32.totalorder %s498, 1
        %s502 = scalar_select %p501, %s498, 1
        %s503 = smul.addr %s500, 2
        %s504 = sadd.s32 %s502, %s503
        %s505 = smul.addr %s504, 8
        %s506 = scalar_lea.vmem %s7, %s505
        %s507 = smul.u32 4, %s32
        %s508 = smul.u32 2, %s33
        %s509 = smul.u32 4, %s32
        %s510 = smul.u32 2, %s33
        %s511 = smul.u32 4, %s32
        %s512 = smul.u32 2, %s33
        %s513 = sld [smem:[#allocation3]]
        %v514 = vld [vmem:[%s458] sm:$0xff]
        %v515 = vld [vmem:[%s458 + $0x8] sm:$0xff]
        %v516 = vld [vmem:[%s458 + $0x10] sm:$0xff]
        %v517 = vld [vmem:[%s458 + $0x18] sm:$0xff]
        %v518 = vld [vmem:[%s458 + $0x20] sm:$0xff]
        %v519 = vld [vmem:[%s458 + $0x28] sm:$0xff]
        %v520 = vld [vmem:[%s458 + $0x30] sm:$0xff]
        %v521 = vld [vmem:[%s458 + $0x38] sm:$0xff]
        %v522 = vstv %s513
        %v523 = vmul.f32 %v514, %v522
        %v524 = vmul.f32 %v515, %v522
        %v525 = vmul.f32 %v516, %v522
        %v526 = vmul.f32 %v517, %v522
        %v527 = vmul.f32 %v518, %v522
        %v528 = vmul.f32 %v519, %v522
        %v529 = vmul.f32 %v520, %v522
        %v530 = vmul.f32 %v521, %v522
        %v531 = vld [vmem:[%s465] sm:$0xff]
        %v532 = vld [vmem:[%s465 + $0x8] sm:$0xff]
        %v533 = vld [vmem:[%s465 + $0x10] sm:$0xff]
        %v534 = vld [vmem:[%s465 + $0x18] sm:$0xff]
        %v535 = vld [vmem:[%s472] sm:$0xff]
        %v536 = vld [vmem:[%s472 + $0x8] sm:$0xff]
        %v537 = vld [vmem:[%s472 + $0x10] sm:$0xff]
        %v538 = vld [vmem:[%s472 + $0x18] sm:$0xff]
        %v539 = vld [vmem:[%s472 + $0x20] sm:$0xff]
        %v540 = vld [vmem:[%s472 + $0x28] sm:$0xff]
        %v541 = vld [vmem:[%s472 + $0x30] sm:$0xff]
        %v542 = vld [vmem:[%s472 + $0x38] sm:$0xff]
        %v543 = vld [vmem:[%s483] sm:$0xff]
        %v544 = vld [vmem:[%s483 + $0x8] sm:$0xff]
        %v545 = vld [vmem:[%s483 + $0x10] sm:$0xff]
        %v546 = vld [vmem:[%s483 + $0x18] sm:$0xff]
        %v547 = vld [vmem:[%s483 + $0x20] sm:$0xff]
        %v548 = vld [vmem:[%s483 + $0x28] sm:$0xff]
        %v549 = vld [vmem:[%s483 + $0x30] sm:$0xff]
        %v550 = vld [vmem:[%s483 + $0x38] sm:$0xff]
        %vm551 = vcmask 64512
        %v553 = vsel %vm551, %v523, 0
        %v556 = vsel %vm551, %v524, 0
        %558 = vmatprep.subr.mxu0 0.0
        %559 = vmatpush1.msra.mxu0 %v531
        %560 = vmatprep.subr.mxu0 0.0
        %561 = vmatpush1.msra.mxu0 0.0
        %562 = vmatprep.subr.mxu0 0.0
        %563 = vmatpush1.msra.mxu0 0.0
        %564 = vmatprep.subr.mxu0 0.0
        %565 = vmatpush1.msra.mxu0 0.0
        %566 = vmatprep.subr.mxu0 0.0
        %567 = vmatpush1.msra.mxu0 0.0
        %568 = vmatprep.subr.mxu0 0.0
        %569 = vmatpush1.msra.mxu0 0.0
        %570 = vmatprep.subr.mxu0 0.0
        %571 = vmatpush1.msra.mxu0 0.0
        %572 = vmatprep.subr.mxu0 0.0
        %573 = vmatpush1.msra.mxu0 0.0
        %574 = vmatprep.subr.mxu0 0.0
        %575 = vmatpush1.msra.mxu0 0.0
        %576 = vmatprep.subr.mxu0 0.0
        %577 = vmatpush1.msra.mxu0 0.0
        %578 = vmatprep.subr.mxu0 0.0
        %579 = vmatpush1.msra.mxu0 0.0
        %580 = vmatprep.subr.mxu0 0.0
        %581 = vmatpush1.msra.mxu0 0.0
        %582 = vmatprep.subr.mxu0 0.0
        %583 = vmatpush1.msra.mxu0 0.0
        %584 = vmatprep.subr.mxu0 0.0
        %585 = vmatpush1.msra.mxu0 0.0
        %586 = vmatprep.subr.mxu0 0.0
        %587 = vmatpush1.msra.mxu0 0.0
        %588 = vmatprep.subr.mxu0 0.0
        %589 = vmatpush1.msra.mxu0 0.0
        %590 = vmatprep.subr.mxu0 0.0
        %591 = vmatpush1.msra.mxu0 0.0
        %592 = vmatprep.subr.mxu0 0.0
        %593 = vmatpush1.msra.mxu0 0.0
        %594 = vmatprep.subr.mxu0 0.0
        %595 = vmatpush1.msra.mxu0 0.0
        %596 = vmatprep.subr.mxu0 0.0
        %597 = vmatpush1.msra.mxu0 0.0
        %598 = vmatprep.subr.mxu0 0.0
        %599 = vmatpush1.msra.mxu0 0.0
        %600 = vmatprep.subr.mxu0 0.0
        %601 = vmatpush1.msra.mxu0 0.0
        %602 = vmatprep.subr.mxu0 0.0
        %603 = vmatpush1.msra.mxu0 0.0
        %604 = vmatprep.subr.mxu0 0.0
        %605 = vmatpush1.msra.mxu0 0.0
        %606 = vmatprep.subr.mxu0 0.0
        %607 = vmatpush1.msra.mxu0 0.0
        %608 = vmatprep.subr.mxu0 0.0
        %609 = vmatpush1.msra.mxu0 0.0
        %610 = vmatprep.subr.mxu0 0.0
        %611 = vmatpush1.msra.mxu0 0.0
        %612 = vmatprep.subr.mxu0 0.0
        %613 = vmatpush1.msra.mxu0 0.0
        %614 = vmatprep.subr.mxu0 0.0
        %615 = vmatpush1.msra.mxu0 0.0
        %616 = vmatprep.subr.mxu0 0.0
        %617 = vmatpush1.msra.mxu0 0.0
        %618 = vmatprep.subr.mxu0 0.0
        %619 = vmatpush1.msra.mxu0 0.0
        %620 = vmatprep.subr.mxu0 0.0
        %621 = vmatpush1.msra.mxu0 0.0
        %622 = vmatprep.mubr.f32.mxu0 0.0
        %623 = vmatmul.mubr.f32.gmra.mrb[0].mxu0 %v553
        %v624 = vpop.f32.mrb[0].mxu0
        %v625 = vadd.f32 %v543, %v624
        %v626 = vpop.f32.mrb[0].mxu0
        %627 = vmatprep.mubr.f32.mxu0 0.0
        %628 = vmatmul.mubr.f32.gmra.mrb[0].mxu0 %v556
        %v629 = vpop.f32.mrb[0].mxu0
        %v630 = vadd.f32 %v544, %v629
        %v631 = vpop.f32.mrb[0].mxu0
        %632 = vdwg.mxu0
        %v634 = vsel %vm551, %v525, 0
        %v637 = vsel %vm551, %v526, 0
        %639 = vmatprep.subr.mxu0 0.0
        %640 = vmatpush1.msra.mxu0 %v532
        %641 = vmatprep.subr.mxu0 0.0
        %642 = vmatpush1.msra.mxu0 0.0
        %643 = vmatprep.subr.mxu0 0.0
        %644 = vmatpush1.msra.mxu0 0.0
        %645 = vmatprep.subr.mxu0 0.0
        %646 = vmatpush1.msra.mxu0 0.0
        %647 = vmatprep.subr.mxu0 0.0
        %648 = vmatpush1.msra.mxu0 0.0
        %649 = vmatprep.subr.mxu0 0.0
        %650 = vmatpush1.msra.mxu0 0.0
        %651 = vmatprep.subr.mxu0 0.0
        %652 = vmatpush1.msra.mxu0 0.0
        %653 = vmatprep.subr.mxu0 0.0
        %654 = vmatpush1.msra.mxu0 0.0
        %655 = vmatprep.subr.mxu0 0.0
        %656 = vmatpush1.msra.mxu0 0.0
        %657 = vmatprep.subr.mxu0 0.0
        %658 = vmatpush1.msra.mxu0 0.0
        %659 = vmatprep.subr.mxu0 0.0
        %660 = vmatpush1.msra.mxu0 0.0
        %661 = vmatprep.subr.mxu0 0.0
        %662 = vmatpush1.msra.mxu0 0.0
        %663 = vmatprep.subr.mxu0 0.0
        %664 = vmatpush1.msra.mxu0 0.0
        %665 = vmatprep.subr.mxu0 0.0
        %666 = vmatpush1.msra.mxu0 0.0
        %667 = vmatprep.subr.mxu0 0.0
        %668 = vmatpush1.msra.mxu0 0.0
        %669 = vmatprep.subr.mxu0 0.0
        %670 = vmatpush1.msra.mxu0 0.0
        %671 = vmatprep.subr.mxu0 0.0
        %672 = vmatpush1.msra.mxu0 0.0
        %673 = vmatprep.subr.mxu0 0.0
        %674 = vmatpush1.msra.mxu0 0.0
        %675 = vmatprep.subr.mxu0 0.0
        %676 = vmatpush1.msra.mxu0 0.0
        %677 = vmatprep.subr.mxu0 0.0
        %678 = vmatpush1.msra.mxu0 0.0
        %679 = vmatprep.subr.mxu0 0.0
        %680 = vmatpush1.msra.mxu0 0.0
        %681 = vmatprep.subr.mxu0 0.0
        %682 = vmatpush1.msra.mxu0 0.0
        %683 = vmatprep.subr.mxu0 0.0
        %684 = vmatpush1.msra.mxu0 0.0
        %685 = vmatprep.subr.mxu0 0.0
        %686 = vmatpush1.msra.mxu0 0.0
        %687 = vmatprep.subr.mxu0 0.0
        %688 = vmatpush1.msra.mxu0 0.0
        %689 = vmatprep.subr.mxu0 0.0
        %690 = vmatpush1.msra.mxu0 0.0
        %691 = vmatprep.subr.mxu0 0.0
        %692 = vmatpush1.msra.mxu0 0.0
        %693 = vmatprep.subr.mxu0 0.0
        %694 = vmatpush1.msra.mxu0 0.0
        %695 = vmatprep.subr.mxu0 0.0
        %696 = vmatpush1.msra.mxu0 0.0
        %697 = vmatprep.subr.mxu0 0.0
        %698 = vmatpush1.msra.mxu0 0.0
        %699 = vmatprep.subr.mxu0 0.0
        %700 = vmatpush1.msra.mxu0 0.0
        %701 = vmatprep.subr.mxu0 0.0
        %702 = vmatpush1.msra.mxu0 0.0
        %703 = vmatprep.mubr.f32.mxu0 0.0
        %704 = vmatmul.mubr.f32.gmra.mrb[0].mxu0 %v634
        %v705 = vpop.f32.mrb[0].mxu0
        %v706 = vadd.f32 %v545, %v705
        %v707 = vpop.f32.mrb[0].mxu0
        %708 = vmatprep.mubr.f32.mxu0 0.0
        %709 = vmatmul.mubr.f32.gmra.mrb[0].mxu0 %v637
        %v710 = vpop.f32.mrb[0].mxu0
        %v711 = vadd.f32 %v546, %v710
        %v712 = vpop.f32.mrb[0].mxu0
        %713 = vdwg.mxu0
        %v715 = vsel %vm551, %v527, 0
        %v718 = vsel %vm551, %v528, 0
        %720 = vmatprep.subr.mxu0 0.0
        %721 = vmatpush1.msra.mxu0 %v533
        %722 = vmatprep.subr.mxu0 0.0
        %723 = vmatpush1.msra.mxu0 0.0
        %724 = vmatprep.subr.mxu0 0.0
        %725 = vmatpush1.msra.mxu0 0.0
        %726 = vmatprep.subr.mxu0 0.0
        %727 = vmatpush1.msra.mxu0 0.0
        %728 = vmatprep.subr.mxu0 0.0
        %729 = vmatpush1.msra.mxu0 0.0
        %730 = vmatprep.subr.mxu0 0.0
        %731 = vmatpush1.msra.mxu0 0.0
        %732 = vmatprep.subr.mxu0 0.0
        %733 = vmatpush1.msra.mxu0 0.0
        %734 = vmatprep.subr.mxu0 0.0
        %735 = vmatpush1.msra.mxu0 0.0
        %736 = vmatprep.subr.mxu0 0.0
        %737 = vmatpush1.msra.mxu0 0.0
        %738 = vmatprep.subr.mxu0 0.0
        %739 = vmatpush1.msra.mxu0 0.0
        %740 = vmatprep.subr.mxu0 0.0
        %741 = vmatpush1.msra.mxu0 0.0
        %742 = vmatprep.subr.mxu0 0.0
        %743 = vmatpush1.msra.mxu0 0.0
        %744 = vmatprep.subr.mxu0 0.0
        %745 = vmatpush1.msra.mxu0 0.0
        %746 = vmatprep.subr.mxu0 0.0
        %747 = vmatpush1.msra.mxu0 0.0
        %748 = vmatprep.subr.mxu0 0.0
        %749 = vmatpush1.msra.mxu0 0.0
        %750 = vmatprep.subr.mxu0 0.0
        %751 = vmatpush1.msra.mxu0 0.0
        %752 = vmatprep.subr.mxu0 0.0
        %753 = vmatpush1.msra.mxu0 0.0
        %754 = vmatprep.subr.mxu0 0.0
        %755 = vmatpush1.msra.mxu0 0.0
        %756 = vmatprep.subr.mxu0 0.0
        %757 = vmatpush1.msra.mxu0 0.0
        %758 = vmatprep.subr.mxu0 0.0
        %759 = vmatpush1.msra.mxu0 0.0
        %760 = vmatprep.subr.mxu0 0.0
        %761 = vmatpush1.msra.mxu0 0.0
        %762 = vmatprep.subr.mxu0 0.0
        %763 = vmatpush1.msra.mxu0 0.0
        %764 = vmatprep.subr.mxu0 0.0
        %765 = vmatpush1.msra.mxu0 0.0
        %766 = vmatprep.subr.mxu0 0.0
        %767 = vmatpush1.msra.mxu0 0.0
        %768 = vmatprep.subr.mxu0 0.0
        %769 = vmatpush1.msra.mxu0 0.0
        %770 = vmatprep.subr.mxu0 0.0
        %771 = vmatpush1.msra.mxu0 0.0
        %772 = vmatprep.subr.mxu0 0.0
        %773 = vmatpush1.msra.mxu0 0.0
        %774 = vmatprep.subr.mxu0 0.0
        %775 = vmatpush1.msra.mxu0 0.0
        %776 = vmatprep.subr.mxu0 0.0
        %777 = vmatpush1.msra.mxu0 0.0
        %778 = vmatprep.subr.mxu0 0.0
        %779 = vmatpush1.msra.mxu0 0.0
        %780 = vmatprep.subr.mxu0 0.0
        %781 = vmatpush1.msra.mxu0 0.0
        %782 = vmatprep.subr.mxu0 0.0
        %783 = vmatpush1.msra.mxu0 0.0
        %784 = vmatprep.mubr.f32.mxu0 0.0
        %785 = vmatmul.mubr.f32.gmra.mrb[0].mxu0 %v715
        %v786 = vpop.f32.mrb[0].mxu0
        %v787 = vadd.f32 %v547, %v786
        %v788 = vpop.f32.mrb[0].mxu0
        %789 = vmatprep.mubr.f32.mxu0 0.0
        %790 = vmatmul.mubr.f32.gmra.mrb[0].mxu0 %v718
        %v791 = vpop.f32.mrb[0].mxu0
        %v792 = vadd.f32 %v548, %v791
        %v793 = vpop.f32.mrb[0].mxu0
        %794 = vdwg.mxu0
        %v796 = vsel %vm551, %v529, 0
        %v799 = vsel %vm551, %v530, 0
        %801 = vmatprep.subr.mxu0 0.0
        %802 = vmatpush1.msra.mxu0 %v534
        %803 = vmatprep.subr.mxu0 0.0
        %804 = vmatpush1.msra.mxu0 0.0
        %805 = vmatprep.subr.mxu0 0.0
        %806 = vmatpush1.msra.mxu0 0.0
        %807 = vmatprep.subr.mxu0 0.0
        %808 = vmatpush1.msra.mxu0 0.0
        %809 = vmatprep.subr.mxu0 0.0
        %810 = vmatpush1.msra.mxu0 0.0
        %811 = vmatprep.subr.mxu0 0.0
        %812 = vmatpush1.msra.mxu0 0.0
        %813 = vmatprep.subr.mxu0 0.0
        %814 = vmatpush1.msra.mxu0 0.0
        %815 = vmatprep.subr.mxu0 0.0
        %816 = vmatpush1.msra.mxu0 0.0
        %817 = vmatprep.subr.mxu0 0.0
        %818 = vmatpush1.msra.mxu0 0.0
        %819 = vmatprep.subr.mxu0 0.0
        %820 = vmatpush1.msra.mxu0 0.0
        %821 = vmatprep.subr.mxu0 0.0
        %822 = vmatpush1.msra.mxu0 0.0
        %823 = vmatprep.subr.mxu0 0.0
        %824 = vmatpush1.msra.mxu0 0.0
        %825 = vmatprep.subr.mxu0 0.0
        %826 = vmatpush1.msra.mxu0 0.0
        %827 = vmatprep.subr.mxu0 0.0
        %828 = vmatpush1.msra.mxu0 0.0
        %829 = vmatprep.subr.mxu0 0.0
        %830 = vmatpush1.msra.mxu0 0.0
        %831 = vmatprep.subr.mxu0 0.0
        %832 = vmatpush1.msra.mxu0 0.0
        %833 = vmatprep.subr.mxu0 0.0
        %834 = vmatpush1.msra.mxu0 0.0
        %835 = vmatprep.subr.mxu0 0.0
        %836 = vmatpush1.msra.mxu0 0.0
        %837 = vmatprep.subr.mxu0 0.0
        %838 = vmatpush1.msra.mxu0 0.0
        %839 = vmatprep.subr.mxu0 0.0
        %840 = vmatpush1.msra.mxu0 0.0
        %841 = vmatprep.subr.mxu0 0.0
        %842 = vmatpush1.msra.mxu0 0.0
        %843 = vmatprep.subr.mxu0 0.0
        %844 = vmatpush1.msra.mxu0 0.0
        %845 = vmatprep.subr.mxu0 0.0
        %846 = vmatpush1.msra.mxu0 0.0
        %847 = vmatprep.subr.mxu0 0.0
        %848 = vmatpush1.msra.mxu0 0.0
        %849 = vmatprep.subr.mxu0 0.0
        %850 = vmatpush1.msra.mxu0 0.0
        %851 = vmatprep.subr.mxu0 0.0
        %852 = vmatpush1.msra.mxu0 0.0
        %853 = vmatprep.subr.mxu0 0.0
        %854 = vmatpush1.msra.mxu0 0.0
        %855 = vmatprep.subr.mxu0 0.0
        %856 = vmatpush1.msra.mxu0 0.0
        %857 = vmatprep.subr.mxu0 0.0
        %858 = vmatpush1.msra.mxu0 0.0
        %859 = vmatprep.subr.mxu0 0.0
        %860 = vmatpush1.msra.mxu0 0.0
        %861 = vmatprep.subr.mxu0 0.0
        %862 = vmatpush1.msra.mxu0 0.0
        %863 = vmatprep.subr.mxu0 0.0
        %864 = vmatpush1.msra.mxu0 0.0
        %865 = vmatprep.mubr.f32.mxu0 0.0
        %866 = vmatmul.mubr.f32.gmra.mrb[0].mxu0 %v796
        %v867 = vpop.f32.mrb[0].mxu0
        %v868 = vadd.f32 %v549, %v867
        %v869 = vpop.f32.mrb[0].mxu0
        %870 = vmatprep.mubr.f32.mxu0 0.0
        %871 = vmatmul.mubr.f32.gmra.mrb[0].mxu0 %v799
        %v872 = vpop.f32.mrb[0].mxu0
        %v873 = vadd.f32 %v550, %v872
        %v874 = vpop.f32.mrb[0].mxu0
        %875 = vdwg.mxu0
        %v876 = vld [vmem:[%s490] sm:$0xff]
        %v877 = vld [vmem:[%s490 + $0x8] sm:$0xff]
        %v878 = vadd.f32 %v625, %v876
        %v879 = vadd.f32 %v630, %v877
        %v880 = vadd.f32 %v706, %v876
        %v881 = vadd.f32 %v711, %v877
        %v882 = vadd.f32 %v787, %v876
        %v883 = vadd.f32 %v792, %v877
        %v884 = vadd.f32 %v868, %v876
        %v885 = vadd.f32 %v873, %v877
        %v886 = vld [vmem:[%s495] sm:$0x1]
        %v887 = vld [vmem:[%s495 + $0x1] sm:$0x1]
        %v888 = vld [vmem:[%s495 + $0x2] sm:$0x1]
        %v889 = vld [vmem:[%s495 + $0x3] sm:$0x1]
        %v894 = vlaneseq
        %v895 = vshrl.u32 %v894, 7
        %v896 = vsub.s32 0, %v895
        %v897 = vrot.slane %v886, %v896
        %v898 = vlaneseq
        %v899 = vshrl.u32 %v898, 7
        %v900 = vsub.s32 0, %v899
        %v901 = vrot.slane %v887, %v900
        %v902 = vlaneseq
        %v903 = vshrl.u32 %v902, 7
        %v904 = vsub.s32 0, %v903
        %v905 = vrot.slane %v888, %v904
        %v906 = vlaneseq
        %v907 = vshrl.u32 %v906, 7
        %v908 = vsub.s32 0, %v907
        %v909 = vrot.slane %v889, %v908
        %v914 = vadd.f32 %v878, %v897
        %v915 = vadd.f32 %v879, %v897
        %v916 = vadd.f32 %v880, %v901
        %v917 = vadd.f32 %v881, %v901
        %v918 = vadd.f32 %v882, %v905
        %v919 = vadd.f32 %v883, %v905
        %v920 = vadd.f32 %v884, %v909
        %v921 = vadd.f32 %v885, %v909
        %vm922 = vcmask 130048
        %923 = vst.msk [vmem:[%s448] sm:$0xff] %vm922, %v914
        %924 = vst.msk [vmem:[%s448 + $0x8] sm:$0xff] %vm922, %v915
        %925 = vst.msk [vmem:[%s448 + $0x10] sm:$0xff] %vm922, %v916
        %926 = vst.msk [vmem:[%s448 + $0x18] sm:$0xff] %vm922, %v917
        %927 = vst.msk [vmem:[%s448 + $0x20] sm:$0xff] %vm922, %v918
        %928 = vst.msk [vmem:[%s448 + $0x28] sm:$0xff] %vm922, %v919
        %929 = vst.msk [vmem:[%s448 + $0x30] sm:$0xff] %vm922, %v920
        %930 = vst.msk [vmem:[%s448 + $0x38] sm:$0xff] %vm922, %v921
        %v931 = vsel %vm922, %v914, -inf
        %932 = vmax.xlane.f32.xlu0 %v931
        %v933 = vpop.xlane.xlu0 %932
        %v934 = vsel %vm922, %v915, -inf
        %935 = vmax.xlane.f32.xlu0 %v934
        %v936 = vpop.xlane.xlu0 %935
        %v937 = vsel %vm922, %v916, -inf
        %938 = vmax.xlane.f32.xlu0 %v937
        %v939 = vpop.xlane.xlu0 %938
        %v940 = vsel %vm922, %v917, -inf
        %941 = vmax.xlane.f32.xlu0 %v940
        %v942 = vpop.xlane.xlu0 %941
        %v943 = vsel %vm922, %v918, -inf
        %944 = vmax.xlane.f32.xlu0 %v943
        %v945 = vpop.xlane.xlu0 %944
        %v946 = vsel %vm922, %v919, -inf
        %947 = vmax.xlane.f32.xlu0 %v946
        %v948 = vpop.xlane.xlu0 %947
        %v949 = vsel %vm922, %v920, -inf
        %950 = vmax.xlane.f32.xlu0 %v949
        %v951 = vpop.xlane.xlu0 %950
        %v952 = vsel %vm922, %v921, -inf
        %953 = vmax.xlane.f32.xlu0 %v952
        %v954 = vpop.xlane.xlu0 %953
        %v955 = vsub.f32 %v914, %v933
        %v956 = vsub.f32 %v915, %v936
        %v957 = vsub.f32 %v916, %v939
        %v958 = vsub.f32 %v917, %v942
        %v959 = vsub.f32 %v918, %v945
        %v960 = vsub.f32 %v919, %v948
        %v961 = vsub.f32 %v920, %v951
        %v962 = vsub.f32 %v921, %v954
        %v963 = vmul.f32 %v955, 1.442695
        %v964 = vpow.pop %v963
        %v965 = vmul.f32 %v956, 1.442695
        %v966 = vpow.pop %v965
        %v967 = vmul.f32 %v957, 1.442695
        %v968 = vpow.pop %v967
        %v969 = vmul.f32 %v958, 1.442695
        %v970 = vpow.pop %v969
        %v971 = vmul.f32 %v959, 1.442695
        %v972 = vpow.pop %v971
        %v973 = vmul.f32 %v960, 1.442695
        %v974 = vpow.pop %v973
        %v975 = vmul.f32 %v961, 1.442695
        %v976 = vpow.pop %v975
        %v977 = vmul.f32 %v962, 1.442695
        %v978 = vpow.pop %v977
        %v979 = vsel %vm922, %v964, 0.0
        %980 = vadd.xlane.f32.xlu0 %v979
        %v981 = vpop.xlane.xlu0 %980
        %v982 = vsel %vm922, %v966, 0.0
        %983 = vadd.xlane.f32.xlu0 %v982
        %v984 = vpop.xlane.xlu0 %983
        %v985 = vsel %vm922, %v968, 0.0
        %986 = vadd.xlane.f32.xlu0 %v985
        %v987 = vpop.xlane.xlu0 %986
        %v988 = vsel %vm922, %v970, 0.0
        %989 = vadd.xlane.f32.xlu0 %v988
        %v990 = vpop.xlane.xlu0 %989
        %v991 = vsel %vm922, %v972, 0.0
        %992 = vadd.xlane.f32.xlu0 %v991
        %v993 = vpop.xlane.xlu0 %992
        %v994 = vsel %vm922, %v974, 0.0
        %995 = vadd.xlane.f32.xlu0 %v994
        %v996 = vpop.xlane.xlu0 %995
        %v997 = vsel %vm922, %v976, 0.0
        %998 = vadd.xlane.f32.xlu0 %v997
        %v999 = vpop.xlane.xlu0 %998
        %v1000 = vsel %vm922, %v978, 0.0
        %1001 = vadd.xlane.f32.xlu0 %v1000
        %v1002 = vpop.xlane.xlu0 %1001
        %v1003 = vrcp.pop %v981
        %v1004 = vrcp.pop %v984
        %v1005 = vrcp.pop %v987
        %v1006 = vrcp.pop %v990
        %v1007 = vrcp.pop %v993
        %v1008 = vrcp.pop %v996
        %v1009 = vrcp.pop %v999
        %v1010 = vrcp.pop %v1002
        %v1011 = vmul.f32 %v964, %v1003
        %v1012 = vmul.f32 %v966, %v1004
        %v1013 = vmul.f32 %v968, %v1005
        %v1014 = vmul.f32 %v970, %v1006
        %v1015 = vmul.f32 %v972, %v1007
        %v1016 = vmul.f32 %v974, %v1008
        %v1017 = vmul.f32 %v976, %v1009
        %v1018 = vmul.f32 %v978, %v1010
        %1019 = vst.msk [vmem:[%s441] sm:$0xff] %vm922, %v1011
        %1020 = vst.msk [vmem:[%s441 + $0x8] sm:$0xff] %vm922, %v1012
        %1021 = vst.msk [vmem:[%s441 + $0x10] sm:$0xff] %vm922, %v1013
        %1022 = vst.msk [vmem:[%s441 + $0x18] sm:$0xff] %vm922, %v1014
        %1023 = vst.msk [vmem:[%s441 + $0x20] sm:$0xff] %vm922, %v1015
        %1024 = vst.msk [vmem:[%s441 + $0x28] sm:$0xff] %vm922, %v1016
        %1025 = vst.msk [vmem:[%s441 + $0x30] sm:$0xff] %vm922, %v1017
        %1026 = vst.msk [vmem:[%s441 + $0x38] sm:$0xff] %vm922, %v1018
        %v1028 = vsel %vm922, %v1011, 0
        %v1031 = vsel %vm922, %v1012, 0
        %1033 = vmatprep.subr.mxu0 0.0
        %1034 = vmatpush1.msra.mxu0 %v535
        %1035 = vmatprep.subr.mxu0 0.0
        %1036 = vmatpush1.msra.mxu0 %v536
        %1037 = vmatprep.subr.mxu0 0.0
        %1038 = vmatpush1.msra.mxu0 0.0
        %1039 = vmatprep.subr.mxu0 0.0
        %1040 = vmatpush1.msra.mxu0 0.0
        %1041 = vmatprep.subr.mxu0 0.0
        %1042 = vmatpush1.msra.mxu0 0.0
        %1043 = vmatprep.subr.mxu0 0.0
        %1044 = vmatpush1.msra.mxu0 0.0
        %1045 = vmatprep.subr.mxu0 0.0
        %1046 = vmatpush1.msra.mxu0 0.0
        %1047 = vmatprep.subr.mxu0 0.0
        %1048 = vmatpush1.msra.mxu0 0.0
        %1049 = vmatprep.subr.mxu0 0.0
        %1050 = vmatpush1.msra.mxu0 0.0
        %1051 = vmatprep.subr.mxu0 0.0
        %1052 = vmatpush1.msra.mxu0 0.0
        %1053 = vmatprep.subr.mxu0 0.0
        %1054 = vmatpush1.msra.mxu0 0.0
        %1055 = vmatprep.subr.mxu0 0.0
        %1056 = vmatpush1.msra.mxu0 0.0
        %1057 = vmatprep.subr.mxu0 0.0
        %1058 = vmatpush1.msra.mxu0 0.0
        %1059 = vmatprep.subr.mxu0 0.0
        %1060 = vmatpush1.msra.mxu0 0.0
        %1061 = vmatprep.subr.mxu0 0.0
        %1062 = vmatpush1.msra.mxu0 0.0
        %1063 = vmatprep.subr.mxu0 0.0
        %1064 = vmatpush1.msra.mxu0 0.0
        %1065 = vmatprep.subr.mxu0 0.0
        %1066 = vmatpush1.msra.mxu0 0.0
        %1067 = vmatprep.subr.mxu0 0.0
        %1068 = vmatpush1.msra.mxu0 0.0
        %1069 = vmatprep.subr.mxu0 0.0
        %1070 = vmatpush1.msra.mxu0 0.0
        %1071 = vmatprep.subr.mxu0 0.0
        %1072 = vmatpush1.msra.mxu0 0.0
        %1073 = vmatprep.subr.mxu0 0.0
        %1074 = vmatpush1.msra.mxu0 0.0
        %1075 = vmatprep.subr.mxu0 0.0
        %1076 = vmatpush1.msra.mxu0 0.0
        %1077 = vmatprep.subr.mxu0 0.0
        %1078 = vmatpush1.msra.mxu0 0.0
        %1079 = vmatprep.subr.mxu0 0.0
        %1080 = vmatpush1.msra.mxu0 0.0
        %1081 = vmatprep.subr.mxu0 0.0
        %1082 = vmatpush1.msra.mxu0 0.0
        %1083 = vmatprep.subr.mxu0 0.0
        %1084 = vmatpush1.msra.mxu0 0.0
        %1085 = vmatprep.subr.mxu0 0.0
        %1086 = vmatpush1.msra.mxu0 0.0
        %1087 = vmatprep.subr.mxu0 0.0
        %1088 = vmatpush1.msra.mxu0 0.0
        %1089 = vmatprep.subr.mxu0 0.0
        %1090 = vmatpush1.msra.mxu0 0.0
        %1091 = vmatprep.subr.mxu0 0.0
        %1092 = vmatpush1.msra.mxu0 0.0
        %1093 = vmatprep.subr.mxu0 0.0
        %1094 = vmatpush1.msra.mxu0 0.0
        %1095 = vmatprep.subr.mxu0 0.0
        %1096 = vmatpush1.msra.mxu0 0.0
        %1097 = vmatprep.mubr.f32.mxu0 0.0
        %1098 = vmatmul.mubr.f32.gmra.mrb[0].mxu0 %v1028
        %v1099 = vpop.f32.mrb[0].mxu0
        %v1100 = vadd.f32 0.0, %v1099
        %v1101 = vpop.f32.mrb[0].mxu0
        %1102 = vmatprep.mubr.f32.mxu0 0.0
        %1103 = vmatmul.mubr.f32.gmra.mrb[0].mxu0 %v1031
        %v1104 = vpop.f32.mrb[0].mxu0
        %v1105 = vadd.f32 0.0, %v1104
        %v1106 = vpop.f32.mrb[0].mxu0
        %1107 = vdwg.mxu0
        %v1109 = vsel %vm922, %v1013, 0
        %v1112 = vsel %vm922, %v1014, 0
        %1114 = vmatprep.subr.mxu0 0.0
        %1115 = vmatpush1.msra.mxu0 %v537
        %1116 = vmatprep.subr.mxu0 0.0
        %1117 = vmatpush1.msra.mxu0 %v538
        %1118 = vmatprep.subr.mxu0 0.0
        %1119 = vmatpush1.msra.mxu0 0.0
        %1120 = vmatprep.subr.mxu0 0.0
        %1121 = vmatpush1.msra.mxu0 0.0
        %1122 = vmatprep.subr.mxu0 0.0
        %1123 = vmatpush1.msra.mxu0 0.0
        %1124 = vmatprep.subr.mxu0 0.0
        %1125 = vmatpush1.msra.mxu0 0.0
        %1126 = vmatprep.subr.mxu0 0.0
        %1127 = vmatpush1.msra.mxu0 0.0
        %1128 = vmatprep.subr.mxu0 0.0
        %1129 = vmatpush1.msra.mxu0 0.0
        %1130 = vmatprep.subr.mxu0 0.0
        %1131 = vmatpush1.msra.mxu0 0.0
        %1132 = vmatprep.subr.mxu0 0.0
        %1133 = vmatpush1.msra.mxu0 0.0
        %1134 = vmatprep.subr.mxu0 0.0
        %1135 = vmatpush1.msra.mxu0 0.0
        %1136 = vmatprep.subr.mxu0 0.0
        %1137 = vmatpush1.msra.mxu0 0.0
        %1138 = vmatprep.subr.mxu0 0.0
        %1139 = vmatpush1.msra.mxu0 0.0
        %1140 = vmatprep.subr.mxu0 0.0
        %1141 = vmatpush1.msra.mxu0 0.0
        %1142 = vmatprep.subr.mxu0 0.0
        %1143 = vmatpush1.msra.mxu0 0.0
        %1144 = vmatprep.subr.mxu0 0.0
        %1145 = vmatpush1.msra.mxu0 0.0
        %1146 = vmatprep.subr.mxu0 0.0
        %1147 = vmatpush1.msra.mxu0 0.0
        %1148 = vmatprep.subr.mxu0 0.0
        %1149 = vmatpush1.msra.mxu0 0.0
        %1150 = vmatprep.subr.mxu0 0.0
        %1151 = vmatpush1.msra.mxu0 0.0
        %1152 = vmatprep.subr.mxu0 0.0
        %1153 = vmatpush1.msra.mxu0 0.0
        %1154 = vmatprep.subr.mxu0 0.0
        %1155 = vmatpush1.msra.mxu0 0.0
        %1156 = vmatprep.subr.mxu0 0.0
        %1157 = vmatpush1.msra.mxu0 0.0
        %1158 = vmatprep.subr.mxu0 0.0
        %1159 = vmatpush1.msra.mxu0 0.0
        %1160 = vmatprep.subr.mxu0 0.0
        %1161 = vmatpush1.msra.mxu0 0.0
        %1162 = vmatprep.subr.mxu0 0.0
        %1163 = vmatpush1.msra.mxu0 0.0
        %1164 = vmatprep.subr.mxu0 0.0
        %1165 = vmatpush1.msra.mxu0 0.0
        %1166 = vmatprep.subr.mxu0 0.0
        %1167 = vmatpush1.msra.mxu0 0.0
        %1168 = vmatprep.subr.mxu0 0.0
        %1169 = vmatpush1.msra.mxu0 0.0
        %1170 = vmatprep.subr.mxu0 0.0
        %1171 = vmatpush1.msra.mxu0 0.0
        %1172 = vmatprep.subr.mxu0 0.0
        %1173 = vmatpush1.msra.mxu0 0.0
        %1174 = vmatprep.subr.mxu0 0.0
        %1175 = vmatpush1.msra.mxu0 0.0
        %1176 = vmatprep.subr.mxu0 0.0
        %1177 = vmatpush1.msra.mxu0 0.0
        %1178 = vmatprep.mubr.f32.mxu0 0.0
        %1179 = vmatmul.mubr.f32.gmra.mrb[0].mxu0 %v1109
        %v1180 = vpop.f32.mrb[0].mxu0
        %v1181 = vadd.f32 0.0, %v1180
        %v1182 = vpop.f32.mrb[0].mxu0
        %1183 = vmatprep.mubr.f32.mxu0 0.0
        %1184 = vmatmul.mubr.f32.gmra.mrb[0].mxu0 %v1112
        %v1185 = vpop.f32.mrb[0].mxu0
        %v1186 = vadd.f32 0.0, %v1185
        %v1187 = vpop.f32.mrb[0].mxu0
        %1188 = vdwg.mxu0
        %v1190 = vsel %vm922, %v1015, 0
        %v1193 = vsel %vm922, %v1016, 0
        %1195 = vmatprep.subr.mxu0 0.0
        %1196 = vmatpush1.msra.mxu0 %v539
        %1197 = vmatprep.subr.mxu0 0.0
        %1198 = vmatpush1.msra.mxu0 %v540
        %1199 = vmatprep.subr.mxu0 0.0
        %1200 = vmatpush1.msra.mxu0 0.0
        %1201 = vmatprep.subr.mxu0 0.0
        %1202 = vmatpush1.msra.mxu0 0.0
        %1203 = vmatprep.subr.mxu0 0.0
        %1204 = vmatpush1.msra.mxu0 0.0
        %1205 = vmatprep.subr.mxu0 0.0
        %1206 = vmatpush1.msra.mxu0 0.0
        %1207 = vmatprep.subr.mxu0 0.0
        %1208 = vmatpush1.msra.mxu0 0.0
        %1209 = vmatprep.subr.mxu0 0.0
        %1210 = vmatpush1.msra.mxu0 0.0
        %1211 = vmatprep.subr.mxu0 0.0
        %1212 = vmatpush1.msra.mxu0 0.0
        %1213 = vmatprep.subr.mxu0 0.0
        %1214 = vmatpush1.msra.mxu0 0.0
        %1215 = vmatprep.subr.mxu0 0.0
        %1216 = vmatpush1.msra.mxu0 0.0
        %1217 = vmatprep.subr.mxu0 0.0
        %1218 = vmatpush1.msra.mxu0 0.0
        %1219 = vmatprep.subr.mxu0 0.0
        %1220 = vmatpush1.msra.mxu0 0.0
        %1221 = vmatprep.subr.mxu0 0.0
        %1222 = vmatpush1.msra.mxu0 0.0
        %1223 = vmatprep.subr.mxu0 0.0
        %1224 = vmatpush1.msra.mxu0 0.0
        %1225 = vmatprep.subr.mxu0 0.0
        %1226 = vmatpush1.msra.mxu0 0.0
        %1227 = vmatprep.subr.mxu0 0.0
        %1228 = vmatpush1.msra.mxu0 0.0
        %1229 = vmatprep.subr.mxu0 0.0
        %1230 = vmatpush1.msra.mxu0 0.0
        %1231 = vmatprep.subr.mxu0 0.0
        %1232 = vmatpush1.msra.mxu0 0.0
        %1233 = vmatprep.subr.mxu0 0.0
        %1234 = vmatpush1.msra.mxu0 0.0
        %1235 = vmatprep.subr.mxu0 0.0
        %1236 = vmatpush1.msra.mxu0 0.0
        %1237 = vmatprep.subr.mxu0 0.0
        %1238 = vmatpush1.msra.mxu0 0.0
        %1239 = vmatprep.subr.mxu0 0.0
        %1240 = vmatpush1.msra.mxu0 0.0
        %1241 = vmatprep.subr.mxu0 0.0
        %1242 = vmatpush1.msra.mxu0 0.0
        %1243 = vmatprep.subr.mxu0 0.0
        %1244 = vmatpush1.msra.mxu0 0.0
        %1245 = vmatprep.subr.mxu0 0.0
        %1246 = vmatpush1.msra.mxu0 0.0
        %1247 = vmatprep.subr.mxu0 0.0
        %1248 = vmatpush1.msra.mxu0 0.0
        %1249 = vmatprep.subr.mxu0 0.0
        %1250 = vmatpush1.msra.mxu0 0.0
        %1251 = vmatprep.subr.mxu0 0.0
        %1252 = vmatpush1.msra.mxu0 0.0
        %1253 = vmatprep.subr.mxu0 0.0
        %1254 = vmatpush1.msra.mxu0 0.0
        %1255 = vmatprep.subr.mxu0 0.0
        %1256 = vmatpush1.msra.mxu0 0.0
        %1257 = vmatprep.subr.mxu0 0.0
        %1258 = vmatpush1.msra.mxu0 0.0
        %1259 = vmatprep.mubr.f32.mxu0 0.0
        %1260 = vmatmul.mubr.f32.gmra.mrb[0].mxu0 %v1190
        %v1261 = vpop.f32.mrb[0].mxu0
        %v1262 = vadd.f32 0.0, %v1261
        %v1263 = vpop.f32.mrb[0].mxu0
        %1264 = vmatprep.mubr.f32.mxu0 0.0
        %1265 = vmatmul.mubr.f32.gmra.mrb[0].mxu0 %v1193
        %v1266 = vpop.f32.mrb[0].mxu0
        %v1267 = vadd.f32 0.0, %v1266
        %v1268 = vpop.f32.mrb[0].mxu0
        %1269 = vdwg.mxu0
        %v1271 = vsel %vm922, %v1017, 0
        %v1274 = vsel %vm922, %v1018, 0
        %1276 = vmatprep.subr.mxu0 0.0
        %1277 = vmatpush1.msra.mxu0 %v541
        %1278 = vmatprep.subr.mxu0 0.0
        %1279 = vmatpush1.msra.mxu0 %v542
        %1280 = vmatprep.subr.mxu0 0.0
        %1281 = vmatpush1.msra.mxu0 0.0
        %1282 = vmatprep.subr.mxu0 0.0
        %1283 = vmatpush1.msra.mxu0 0.0
        %1284 = vmatprep.subr.mxu0 0.0
        %1285 = vmatpush1.msra.mxu0 0.0
        %1286 = vmatprep.subr.mxu0 0.0
        %1287 = vmatpush1.msra.mxu0 0.0
        %1288 = vmatprep.subr.mxu0 0.0
        %1289 = vmatpush1.msra.mxu0 0.0
        %1290 = vmatprep.subr.mxu0 0.0
        %1291 = vmatpush1.msra.mxu0 0.0
        %1292 = vmatprep.subr.mxu0 0.0
        %1293 = vmatpush1.msra.mxu0 0.0
        %1294 = vmatprep.subr.mxu0 0.0
        %1295 = vmatpush1.msra.mxu0 0.0
        %1296 = vmatprep.subr.mxu0 0.0
        %1297 = vmatpush1.msra.mxu0 0.0
        %1298 = vmatprep.subr.mxu0 0.0
        %1299 = vmatpush1.msra.mxu0 0.0
        %1300 = vmatprep.subr.mxu0 0.0
        %1301 = vmatpush1.msra.mxu0 0.0
        %1302 = vmatprep.subr.mxu0 0.0
        %1303 = vmatpush1.msra.mxu0 0.0
        %1304 = vmatprep.subr.mxu0 0.0
        %1305 = vmatpush1.msra.mxu0 0.0
        %1306 = vmatprep.subr.mxu0 0.0
        %1307 = vmatpush1.msra.mxu0 0.0
        %1308 = vmatprep.subr.mxu0 0.0
        %1309 = vmatpush1.msra.mxu0 0.0
        %1310 = vmatprep.subr.mxu0 0.0
        %1311 = vmatpush1.msra.mxu0 0.0
        %1312 = vmatprep.subr.mxu0 0.0
        %1313 = vmatpush1.msra.mxu0 0.0
        %1314 = vmatprep.subr.mxu0 0.0
        %1315 = vmatpush1.msra.mxu0 0.0
        %1316 = vmatprep.subr.mxu0 0.0
        %1317 = vmatpush1.msra.mxu0 0.0
        %1318 = vmatprep.subr.mxu0 0.0
        %1319 = vmatpush1.msra.mxu0 0.0
        %1320 = vmatprep.subr.mxu0 0.0
        %1321 = vmatpush1.msra.mxu0 0.0
        %1322 = vmatprep.subr.mxu0 0.0
        %1323 = vmatpush1.msra.mxu0 0.0
        %1324 = vmatprep.subr.mxu0 0.0
        %1325 = vmatpush1.msra.mxu0 0.0
        %1326 = vmatprep.subr.mxu0 0.0
        %1327 = vmatpush1.msra.mxu0 0.0
        %1328 = vmatprep.subr.mxu0 0.0
        %1329 = vmatpush1.msra.mxu0 0.0
        %1330 = vmatprep.subr.mxu0 0.0
        %1331 = vmatpush1.msra.mxu0 0.0
        %1332 = vmatprep.subr.mxu0 0.0
        %1333 = vmatpush1.msra.mxu0 0.0
        %1334 = vmatprep.subr.mxu0 0.0
        %1335 = vmatpush1.msra.mxu0 0.0
        %1336 = vmatprep.subr.mxu0 0.0
        %1337 = vmatpush1.msra.mxu0 0.0
        %1338 = vmatprep.subr.mxu0 0.0
        %1339 = vmatpush1.msra.mxu0 0.0
        %1340 = vmatprep.mubr.f32.mxu0 0.0
        %1341 = vmatmul.mubr.f32.gmra.mrb[0].mxu0 %v1271
        %v1342 = vpop.f32.mrb[0].mxu0
        %v1343 = vadd.f32 0.0, %v1342
        %v1344 = vpop.f32.mrb[0].mxu0
        %1345 = vmatprep.mubr.f32.mxu0 0.0
        %1346 = vmatmul.mubr.f32.gmra.mrb[0].mxu0 %v1274
        %v1347 = vpop.f32.mrb[0].mxu0
        %v1348 = vadd.f32 0.0, %v1347
        %v1349 = vpop.f32.mrb[0].mxu0
        %1350 = vdwg.mxu0
        %1351 = vst.msk [vmem:[%s506] sm:$0xff] %vm551, %v1100
        %1352 = vst.msk [vmem:[%s506 + $0x8] sm:$0xff] %vm551, %v1105
        %1353 = vst.msk [vmem:[%s506 + $0x10] sm:$0xff] %vm551, %v1181
        %1354 = vst.msk [vmem:[%s506 + $0x18] sm:$0xff] %vm551, %v1186
        %1355 = vst.msk [vmem:[%s506 + $0x20] sm:$0xff] %vm551, %v1262
        %1356 = vst.msk [vmem:[%s506 + $0x28] sm:$0xff] %vm551, %v1267
        %1357 = vst.msk [vmem:[%s506 + $0x30] sm:$0xff] %vm551, %v1343
        %1358 = vst.msk [vmem:[%s506 + $0x38] sm:$0xff] %vm551, %v1348
        %s1359 = smul.u32 4, %s32
        %s1360 = smul.u32 2, %s33
        %p1361 = scmp.lt.s32.totalorder %s1359, 7
        %s1362 = scalar_select %p1361, %s1359, 7
        %p1363 = scmp.lt.s32.totalorder %s1360, 1
        %s1364 = scalar_select %p1363, %s1360, 1
        %s1365 = smul.addr %s1362, 2
        %s1366 = sadd.s32 %s1364, %s1365
        %s1367 = smul.addr %s1366, 8
        %s1368 = scalar_lea.vmem %s7, %s1367
        %s1369 = sand.u32 %s238, 1
        %s1370 = scalar_lea.sflag [#allocation5], %s1369
        %s1371 = sand.u32 %s238, 1
        %s1372 = smul.addr %s1371, 64
        %s1373 = scalar_lea.vmem [#allocation4], %s1372
        %s1374 = sand.u32 %s266, 1
        %s1375 = scalar_lea.sflag [#allocation7], %s1374
        %s1376 = sand.u32 %s266, 1
        %s1377 = smul.addr %s1376, 64
        %s1378 = scalar_lea.vmem [#allocation6], %s1377
        // Predicated region
        $region45: #{tpu_custom_call.1} parent=43 // pred_check
          %p1379 = pneg %p220
        $region46: #{tpu_custom_call.1} parent=43 // pred_check_branch
          %1381 = sbr.rel (%p1379) target = $region48
        $region47: #{tpu_custom_call.1} parent=43 // pred_region
          %s1382 = smul.u32 4, %s32
          %s1383 = smul.u32 2, %s33
        $region48: #{tpu_custom_call.1} parent=43 // pred_fallthru
          _
        // Predicated region
        $region49: #{tpu_custom_call.1} parent=43 // pred_check
          %p1384 = pneg %p248
        $region50: #{tpu_custom_call.1} parent=43 // pred_check_branch
          %1386 = sbr.rel (%p1384) target = $region52
        $region51: #{tpu_custom_call.1} parent=43 // pred_region
          %s1387 = smul.u32 4, %s32
          %s1388 = smul.u32 2, %s33
          %s1390 = ssub.s32 1024, 1024
          %1391 = vsyncadd %s1370, %s1390
          %s1392 = smul.addr %s1387, 2
          %s1393 = sadd.s32 %s1388, %s1392
          %s1394 = smul.addr %s1393, 128
          %s1395 = scalar_lea.hbm %s8, %s1394
          %s1396 = sshll.u32 %s1373, 4
          %s1397 = int_to_ptr.vmem [resolvable:$true] %s1396
          %1402 = dma.vmem_to_hbm [thread:$0]  %s1397, 1024, %s1395, %s1370, 128, 128, 8
        $region52: #{tpu_custom_call.1} parent=43 // pred_fallthru
          _
        // Predicated region
        $region53: #{tpu_custom_call.1} parent=43 // pred_check
          %p1403 = pneg %p276
        $region54: #{tpu_custom_call.1} parent=43 // pred_check_branch
          %1405 = sbr.rel (%p1403) target = $region56
        $region55: #{tpu_custom_call.1} parent=43 // pred_region
          %s1406 = smul.u32 4, %s32
          %s1407 = smul.u32 2, %s33
          %s1409 = ssub.s32 1024, 1024
          %1410 = vsyncadd %s1375, %s1409
          %s1411 = smul.addr %s1406, 2
          %s1412 = sadd.s32 %s1407, %s1411
          %s1413 = smul.addr %s1412, 128
          %s1414 = scalar_lea.hbm %s9, %s1413
          %s1415 = sshll.u32 %s1378, 4
          %s1416 = int_to_ptr.vmem [resolvable:$true] %s1415
          %1421 = dma.vmem_to_hbm [thread:$0]  %s1416, 1024, %s1414, %s1375, 128, 128, 8
        $region56: #{tpu_custom_call.1} parent=43 // pred_fallthru
          _
      $region44: #{tpu_custom_call.1} parent=5 // pred_fallthru
        _
      %p1422 = scmp.le.s32.totalorder 2, %s23
      // Predicated region
      $region57: #{tpu_custom_call.1} parent=5 // pred_check
        %p1423 = pneg %p1422
      $region58: #{tpu_custom_call.1} parent=5 // pred_check_branch
        %1425 = sbr.rel (%p1423) target = $region60
      $region59: #{tpu_custom_call.1} parent=5 // pred_region
        %s1426 = ssub.s32 %s23, 2
        // Predicated region
        $region61: #{tpu_custom_call.1} parent=59 // pred_check
          %p1427 = pneg %p226
        $region62: #{tpu_custom_call.1} parent=59 // pred_check_branch
          %1429 = sbr.rel (%p1427) target = $region64
        $region63: #{tpu_custom_call.1} parent=59 // pred_region
          %s1430 = smul.u32 4, %s34
          %s1431 = smul.u32 2, %s35
          %p1432 = scmp.lt.s32.totalorder %s1430, 7
          %s1433 = scalar_select %p1432, %s1430, 7
          %p1434 = scmp.lt.s32.totalorder %s1431, 1
          %s1435 = scalar_select %p1434, %s1431, 1
          %s1436 = smul.addr %s1433, 2
          %s1437 = sadd.s32 %s1435, %s1436
          %s1438 = smul.addr %s1437, 8
          %s1439 = scalar_lea.vmem %s7, %s1438
        $region64: #{tpu_custom_call.1} parent=59 // pred_fallthru
          _
        // Predicated region
        $region65: #{tpu_custom_call.1} parent=59 // pred_check
          %p1440 = pneg %p254
        $region66: #{tpu_custom_call.1} parent=59 // pred_check_branch
          %1442 = sbr.rel (%p1440) target = $region68
        $region67: #{tpu_custom_call.1} parent=59 // pred_region
          %s1443 = sand.u32 %s239, 1
          %s1444 = scalar_lea.sflag [#allocation5], %s1443
          %s1445 = sand.u32 %s239, 1
          %s1446 = smul.addr %s1445, 64
          %s1447 = scalar_lea.vmem [#allocation4], %s1446
          %1448 = dma.done %s1444, 1024
        $region68: #{tpu_custom_call.1} parent=59 // pred_fallthru
          _
        // Predicated region
        $region69: #{tpu_custom_call.1} parent=59 // pred_check
          %p1449 = pneg %p282
        $region70: #{tpu_custom_call.1} parent=59 // pred_check_branch
          %1451 = sbr.rel (%p1449) target = $region72
        $region71: #{tpu_custom_call.1} parent=59 // pred_region
          %s1452 = sand.u32 %s267, 1
          %s1453 = scalar_lea.sflag [#allocation7], %s1452
          %s1454 = sand.u32 %s267, 1
          %s1455 = smul.addr %s1454, 64
          %s1456 = scalar_lea.vmem [#allocation6], %s1455
          %1457 = dma.done %s1453, 1024
        $region72: #{tpu_custom_call.1} parent=59 // pred_fallthru
          _
      $region60: #{tpu_custom_call.1} parent=5 // pred_fallthru
        _
    $region6: #{tpu_custom_call.1} parent=1 // loop_footer
      %s27 = sadd.s32 1, %s23
    $region7: #{tpu_custom_call.1} parent=1 // loop_footer_branch
      %22 = sbr.rel target = $region3
    $region8: #{tpu_custom_call.1} parent=1 // loop_exit
      _
    %1458 = vsyncpa [#allocation5], 1
    %s1459 = scalar_lea.sflag [#allocation5], 1
    %1460 = vsyncpa %s1459, 1
    %1461 = vsyncpa [#allocation7], 1
    %s1462 = scalar_lea.sflag [#allocation7], 1
    %1463 = vsyncpa %s1462, 1

</llo_original>
